<compile_context>
chip_gen: v7x
topology: tpu7x:2x2x1
jax: 0.10.0
libtpu: 0.0.40
codegen_flags: <defaults>
</compile_context>

<pallas_src>
import functools

import jax
import jax.numpy as jnp
from jax.experimental import pallas as pl
from jax.experimental.pallas import tpu as pltpu


_BATCH_ALIGN = 16  # bf16 sublane packing: one vreg holds (16, 128) bf16.


def _round_up(n, m):
    return ((n + m - 1) // m) * m


def _cdiv(a, b):
    return (a + b - 1) // b


def mlp_kernel(x_ref, w1_ref, b1_ref, w2_ref, b2_ref, w3_ref, b3_ref,
               w4_ref, b4_ref, o_ref):
    # x_ref is already bf16 (cast in the wrapper).  All dots accumulate in f32
    # on the MXU; the elementwise bias/ReLU path stays f32 (VPU filler).
    # Layer 1: Linear(input_size_pad, H) + ReLU
    h = jnp.dot(x_ref[...], w1_ref[...],
                preferred_element_type=jnp.float32) + b1_ref[...]
    h = jnp.maximum(h, 0.0)
    # Layer 2: Linear(H, H) + ReLU
    h = jnp.dot(h.astype(jnp.bfloat16), w2_ref[...],
                preferred_element_type=jnp.float32) + b2_ref[...]
    h = jnp.maximum(h, 0.0)
    # Layer 3: Linear(H, H) + ReLU
    h = jnp.dot(h.astype(jnp.bfloat16), w3_ref[...],
                preferred_element_type=jnp.float32) + b3_ref[...]
    h = jnp.maximum(h, 0.0)
    # Layer 4: Linear(H, num_classes_pad), no activation
    out = jnp.dot(h.astype(jnp.bfloat16), w4_ref[...],
                  preferred_element_type=jnp.float32) + b4_ref[...]
    o_ref[...] = out.astype(o_ref.dtype)


def _weight_spec(shape, single_buffer):
    """Grid-invariant operand: constant block index across the batch grid.
    Mosaic only re-DMAs a block when its index changes, so bandwidth is not
    wasted either way; single_buffer additionally drops the second VMEM
    buffer (pure hygiene at hidden=512)."""
    index_map = lambda i: (0,) * len(shape)
    if single_buffer and hasattr(pl, "Buffered"):
        return pl.BlockSpec(shape, index_map, pipeline_mode=pl.Buffered(1))
    return pl.BlockSpec(shape, index_map)


@functools.partial(jax.jit,
                   static_argnames=("num_classes", "tile_b",
                                    "single_buffer_weights"))
def mlp_forward(x, padded_params, num_classes, *, tile_b=512,
                single_buffer_weights=False):
    """x: (B, T, C) float32 -> (B, num_classes) float32."""
    B = x.shape[0]
    w1, b1, w2, b2, w3, b3, w4, b4 = padded_params
    k1p = w1.shape[0]                                 # padded input size
    hidden = w1.shape[1]                              # padded hidden (512)
    nc_pad = w4.shape[1]                              # padded num_classes (128)

    # Flatten (matches x.view(B, -1)), cast to bf16 in the wrapper, pad the
    # feature dim to k1p (w1's padded rows are zero, so this is exact).
    x2d = x.reshape(B, -1)
    k1 = x2d.shape[1]
    assert k1 <= k1p
    x2d = x2d.astype(jnp.bfloat16)
    if k1 != k1p:
        x2d = jnp.pad(x2d, ((0, 0), (0, k1p - k1)))

    # --- batch tiling: balanced tiles, >=2 grid steps when splittable -------
    b_al = _round_up(B, _BATCH_ALIGN)
    n_tiles = max(_cdiv(b_al, tile_b), 2 if b_al > _BATCH_ALIGN else 1)
    tb = _round_up(_cdiv(b_al, n_tiles), _BATCH_ALIGN)
    b_pad = _round_up(b_al, tb)
    if b_pad != B:
        x2d = jnp.pad(x2d, ((0, b_pad - B), (0, 0)))
    grid = (b_pad // tb,)

    operands = (x2d, w1, b1, w2, b2, w3, b3, w4, b4)

    # --- VMEM budget (double-buffered x/out tiles, weights, f32 intermediates)
    wbuf = 1 if single_buffer_weights else 2
    weight_bytes = sum(int(a.size) * a.dtype.itemsize
                       for a in (w1, w2, w3, w4)) * wbuf
    bias_bytes = sum(int(a.size) * a.dtype.itemsize
                     for a in (b1, b2, b3, b4)) * wbuf
    x_tile_bytes = tb * k1p * x2d.dtype.itemsize * 2
    out_tile_bytes = tb * nc_pad * 4 * 2
    interm_bytes = 4 * tb * hidden * 4
    vmem_est = (weight_bytes + bias_bytes + x_tile_bytes + out_tile_bytes
                + interm_bytes)
    vmem_limit = int(min(max(2 * vmem_est, 16 << 20), 32 << 20))

    flops = 2 * b_pad * (k1p * hidden + 2 * hidden * hidden + hidden * nc_pad)
    bytes_accessed = int(sum(int(a.size) * a.dtype.itemsize for a in operands)
                         + b_pad * nc_pad * 4)

    out = pl.pallas_call(
        mlp_kernel,
        out_shape=jax.ShapeDtypeStruct((b_pad, nc_pad), jnp.float32),
        grid=grid,
        in_specs=[
            pl.BlockSpec((tb, k1p), lambda i: (i, 0)),   # x: tiled over batch
            _weight_spec(w1.shape, single_buffer_weights),
            _weight_spec(b1.shape, single_buffer_weights),
            _weight_spec(w2.shape, single_buffer_weights),
            _weight_spec(b2.shape, single_buffer_weights),
            _weight_spec(w3.shape, single_buffer_weights),
            _weight_spec(b3.shape, single_buffer_weights),
            _weight_spec(w4.shape, single_buffer_weights),
            _weight_spec(b4.shape, single_buffer_weights),
        ],
        out_specs=pl.BlockSpec((tb, nc_pad), lambda i: (i, 0)),
        compiler_params=pltpu.CompilerParams(
            dimension_semantics=("parallel",),
            vmem_limit_bytes=vmem_limit),
        cost_estimate=pl.CostEstimate(
            flops=flops, transcendentals=0, bytes_accessed=bytes_accessed),
    )(*operands)

    return out[:B, :num_classes]


def init_params(key, window_size, n_vars, num_classes, hidden=500):
    """Deterministic init mimicking nn.Linear (uniform +/- 1/sqrt(fan_in)).
    Weights are stored transposed: (in_features, out_features). Unpadded f32."""
    input_size = window_size * n_vars
    dims = [(input_size, hidden), (hidden, hidden), (hidden, hidden),
            (hidden, num_classes)]
    params = []
    for (fan_in, fan_out) in dims:
        key, kw, kb = jax.random.split(key, 3)
        bound = 1.0 / jnp.sqrt(fan_in)
        w = jax.random.uniform(kw, (fan_in, fan_out), jnp.float32, -bound, bound)
        b = jax.random.uniform(kb, (1, fan_out), jnp.float32, -bound, bound)
        params += [w, b]
    return tuple(params)


def prepare_params(params, weight_dtype=jnp.bfloat16):
    """Zero-pad input_size and hidden to multiples of 128 (500->512) and
    num_classes to >=128, cast weights to bf16 (biases stay f32).  Padding is
    exact: padded w1 rows are zero (extra x columns contribute nothing),
    padded hidden channels stay 0 through ReLU, and padded output columns are
    sliced off."""
    w1, b1, w2, b2, w3, b3, w4, b4 = params
    k1, h = w1.shape
    nc = w4.shape[1]
    k1p = _round_up(k1, 128)
    hp = _round_up(h, 128)
    ncp = max(128, _round_up(nc, 128))
    dk, dh, dc = k1p - k1, hp - h, ncp - nc

    w1p = jnp.pad(w1, ((0, dk), (0, dh))).astype(weight_dtype)
    b1p = jnp.pad(b1, ((0, 0), (0, dh)))
    w2p = jnp.pad(w2, ((0, dh), (0, dh))).astype(weight_dtype)
    b2p = jnp.pad(b2, ((0, 0), (0, dh)))
    w3p = jnp.pad(w3, ((0, dh), (0, dh))).astype(weight_dtype)
    b3p = jnp.pad(b3, ((0, 0), (0, dh)))
    w4p = jnp.pad(w4, ((0, dh), (0, dc))).astype(weight_dtype)
    b4p = jnp.pad(b4, ((0, 0), (0, dc)))
    return (w1p, b1p, w2p, b2p, w3p, b3p, w4p, b4p)


def mlp_reference_f32(x, params):
    """Pure-f32 reference (original module semantics, unpadded, eval mode)."""
    B = x.shape[0]
    h = x.reshape(B, -1)
    w1, b1, w2, b2, w3, b3, w4, b4 = params
    h = jnp.maximum(h @ w1 + b1, 0.0)
    h = jnp.maximum(h @ w2 + b2, 0.0)
    h = jnp.maximum(h @ w3 + b3, 0.0)
    return h @ w4 + b4


def mlp_reference_quantized(x, padded_params, num_classes):
    """Pure-JAX reference that mirrors the kernel numerics exactly
    (bf16 inputs to each dot, f32 accumulation, padded dims)."""
    B = x.shape[0]
    w1, b1, w2, b2, w3, b3, w4, b4 = padded_params
    h = x.reshape(B, -1).astype(jnp.float32)
    k1p = w1.shape[0]
    if h.shape[1] != k1p:
        h = jnp.pad(h, ((0, 0), (0, k1p - h.shape[1])))
    h = jnp.maximum(jnp.dot(h.astype(jnp.bfloat16), w1,
                            preferred_element_type=jnp.float32) + b1, 0.0)
    h = jnp.maximum(jnp.dot(h.astype(jnp.bfloat16), w2,
                            preferred_element_type=jnp.float32) + b2, 0.0)
    h = jnp.maximum(jnp.dot(h.astype(jnp.bfloat16), w3,
                            preferred_element_type=jnp.float32) + b3, 0.0)
    out = jnp.dot(h.astype(jnp.bfloat16), w4,
                  preferred_element_type=jnp.float32) + b4
    return out[:, :num_classes]


if __name__ == "__main__":
    B, T, C = 2, 8, 4        # batch=2, window_size=8, n_vars=4
    num_classes = 5

    key = jax.random.PRNGKey(0)
    key, kx = jax.random.split(key)
    x = jax.random.normal(kx, (B, T, C), jnp.float32)
    params = init_params(key, T, C, num_classes)
    padded = prepare_params(params)

    out = mlp_forward(x, padded, num_classes)
    out = jax.block_until_ready(out)
    assert out.shape == (B, num_classes)

    # Exact-ish check vs a reference with identical (bf16-input) numerics.
    ref_q = mlp_reference_quantized(x, padded, num_classes)
    assert jnp.allclose(out, ref_q, atol=1e-3, rtol=1e-3), "mismatch vs quantized ref"

    # Loose sanity check vs the original f32 module semantics (eval mode).
    ref_f32 = mlp_reference_f32(x, params)
    assert jnp.allclose(out, ref_f32, atol=3e-2, rtol=3e-2), "mismatch vs f32 ref"

    print("KERNEL_OK")
</pallas_src>

<mosaic_0001>
module attributes {stable_mosaic.version = 11 : i64} {
  func.func @mlp_kernel(%arg0: i32, %arg1: memref<16x128xbf16, #tpu.memory_space<vmem>>, %arg2: memref<128x512xbf16, #tpu.memory_space<vmem>>, %arg3: memref<1x512xf32, #tpu.memory_space<vmem>>, %arg4: memref<512x512xbf16, #tpu.memory_space<vmem>>, %arg5: memref<1x512xf32, #tpu.memory_space<vmem>>, %arg6: memref<512x512xbf16, #tpu.memory_space<vmem>>, %arg7: memref<1x512xf32, #tpu.memory_space<vmem>>, %arg8: memref<512x128xbf16, #tpu.memory_space<vmem>>, %arg9: memref<1x128xf32, #tpu.memory_space<vmem>>, %arg10: memref<16x128xf32, #tpu.memory_space<vmem>>) attributes {dimension_semantics = [#tpu.dimension_semantics<parallel>], iteration_bounds = array<i64: 1>, scalar_prefetch = 0 : i64, scratch_operands = 0 : i64, tpu.core_type = #tpu.core_type<tc>, window_params = [{transform_indices = @transform_0, window_bounds = array<i64: 16, 128>}, {pipeline_mode = #tpu.pipeline_mode<synchronous>, transform_indices = @transform_1, window_bounds = array<i64: 128, 512>}, {pipeline_mode = #tpu.pipeline_mode<synchronous>, transform_indices = @transform_2, window_bounds = array<i64: 1, 512>}, {pipeline_mode = #tpu.pipeline_mode<synchronous>, transform_indices = @transform_3, window_bounds = array<i64: 512, 512>}, {pipeline_mode = #tpu.pipeline_mode<synchronous>, transform_indices = @transform_4, window_bounds = array<i64: 1, 512>}, {pipeline_mode = #tpu.pipeline_mode<synchronous>, transform_indices = @transform_5, window_bounds = array<i64: 512, 512>}, {pipeline_mode = #tpu.pipeline_mode<synchronous>, transform_indices = @transform_6, window_bounds = array<i64: 1, 512>}, {pipeline_mode = #tpu.pipeline_mode<synchronous>, transform_indices = @transform_7, window_bounds = array<i64: 512, 128>}, {pipeline_mode = #tpu.pipeline_mode<synchronous>, transform_indices = @transform_8, window_bounds = array<i64: 1, 128>}, {transform_indices = @transform_9, window_bounds = array<i64: 16, 128>}]} {
    %c0 = arith.constant 0 : index
    %c0_0 = arith.constant 0 : index
    %0 = vector.load %arg1[%c0, %c0_0] : memref<16x128xbf16, #tpu.memory_space<vmem>>, vector<16x128xbf16>
    %c0_1 = arith.constant 0 : index
    %c0_2 = arith.constant 0 : index
    %1 = vector.load %arg2[%c0_1, %c0_2] : memref<128x512xbf16, #tpu.memory_space<vmem>>, vector<128x512xbf16>
    %cst = arith.constant dense<0.000000e+00> : vector<16x512xf32>
    %2 = tpu.matmul %0, %1, %cst {dimension_numbers = #tpu.dot_dimension_numbers<[1], [0], [0], [1], [0, 0, 1, 1], [], []>} : vector<16x128xbf16>, vector<128x512xbf16>, vector<16x512xf32> -> vector<16x512xf32>
    %c0_3 = arith.constant 0 : index
    %c0_4 = arith.constant 0 : index
    %3 = vector.load %arg3[%c0_3, %c0_4] : memref<1x512xf32, #tpu.memory_space<vmem>>, vector<1x512xf32>
    %4 = vector.broadcast %3 : vector<1x512xf32> to vector<16x512xf32>
    %5 = arith.addf %2, %4 : vector<16x512xf32>
    %cst_5 = arith.constant 0.000000e+00 : f32
    %6 = vector.broadcast %cst_5 : f32 to vector<16x512xf32>
    %7 = arith.maximumf %5, %6 : vector<16x512xf32>
    %8 = arith.truncf %7 : vector<16x512xf32> to vector<16x512xbf16>
    %c0_6 = arith.constant 0 : index
    %c0_7 = arith.constant 0 : index
    %9 = vector.load %arg4[%c0_6, %c0_7] : memref<512x512xbf16, #tpu.memory_space<vmem>>, vector<512x512xbf16>
    %cst_8 = arith.constant dense<0.000000e+00> : vector<16x512xf32>
    %10 = tpu.matmul %8, %9, %cst_8 {dimension_numbers = #tpu.dot_dimension_numbers<[1], [0], [0], [1], [0, 0, 1, 1], [], []>} : vector<16x512xbf16>, vector<512x512xbf16>, vector<16x512xf32> -> vector<16x512xf32>
    %c0_9 = arith.constant 0 : index
    %c0_10 = arith.constant 0 : index
    %11 = vector.load %arg5[%c0_9, %c0_10] : memref<1x512xf32, #tpu.memory_space<vmem>>, vector<1x512xf32>
    %12 = vector.broadcast %11 : vector<1x512xf32> to vector<16x512xf32>
    %13 = arith.addf %10, %12 : vector<16x512xf32>
    %cst_11 = arith.constant 0.000000e+00 : f32
    %14 = vector.broadcast %cst_11 : f32 to vector<16x512xf32>
    %15 = arith.maximumf %13, %14 : vector<16x512xf32>
    %16 = arith.truncf %15 : vector<16x512xf32> to vector<16x512xbf16>
    %c0_12 = arith.constant 0 : index
    %c0_13 = arith.constant 0 : index
    %17 = vector.load %arg6[%c0_12, %c0_13] : memref<512x512xbf16, #tpu.memory_space<vmem>>, vector<512x512xbf16>
    %cst_14 = arith.constant dense<0.000000e+00> : vector<16x512xf32>
    %18 = tpu.matmul %16, %17, %cst_14 {dimension_numbers = #tpu.dot_dimension_numbers<[1], [0], [0], [1], [0, 0, 1, 1], [], []>} : vector<16x512xbf16>, vector<512x512xbf16>, vector<16x512xf32> -> vector<16x512xf32>
    %c0_15 = arith.constant 0 : index
    %c0_16 = arith.constant 0 : index
    %19 = vector.load %arg7[%c0_15, %c0_16] : memref<1x512xf32, #tpu.memory_space<vmem>>, vector<1x512xf32>
    %20 = vector.broadcast %19 : vector<1x512xf32> to vector<16x512xf32>
    %21 = arith.addf %18, %20 : vector<16x512xf32>
    %cst_17 = arith.constant 0.000000e+00 : f32
    %22 = vector.broadcast %cst_17 : f32 to vector<16x512xf32>
    %23 = arith.maximumf %21, %22 : vector<16x512xf32>
    %24 = arith.truncf %23 : vector<16x512xf32> to vector<16x512xbf16>
    %c0_18 = arith.constant 0 : index
    %c0_19 = arith.constant 0 : index
    %25 = vector.load %arg8[%c0_18, %c0_19] : memref<512x128xbf16, #tpu.memory_space<vmem>>, vector<512x128xbf16>
    %cst_20 = arith.constant dense<0.000000e+00> : vector<16x128xf32>
    %26 = tpu.matmul %24, %25, %cst_20 {dimension_numbers = #tpu.dot_dimension_numbers<[1], [0], [0], [1], [0, 0, 1, 1], [], []>} : vector<16x512xbf16>, vector<512x128xbf16>, vector<16x128xf32> -> vector<16x128xf32>
    %c0_21 = arith.constant 0 : index
    %c0_22 = arith.constant 0 : index
    %27 = vector.load %arg9[%c0_21, %c0_22] : memref<1x128xf32, #tpu.memory_space<vmem>>, vector<1x128xf32>
    %28 = vector.broadcast %27 : vector<1x128xf32> to vector<16x128xf32>
    %29 = arith.addf %26, %28 : vector<16x128xf32>
    %c0_23 = arith.constant 0 : index
    %c0_24 = arith.constant 0 : index
    %30 = vector.load %arg10[%c0_23, %c0_24] : memref<16x128xf32, #tpu.memory_space<vmem>>, vector<16x128xf32>
    tpu.vector_store %arg10[%c0_23, %c0_24], %29 {strides = array<i32>} : memref<16x128xf32, #tpu.memory_space<vmem>>, vector<16x128xf32>,
    return
  }
  func.func @transform_0(%arg0: i32) -> (i32, i32) {
    %c0_i32 = arith.constant 0 : i32
    %c0_i32_0 = arith.constant 0 : i32
    return %arg0, %c0_i32 : i32, i32
  }
  func.func @transform_1(%arg0: i32) -> (i32, i32) {
    %c0_i32 = arith.constant 0 : i32
    %c0_i32_0 = arith.constant 0 : i32
    %c0_i32_1 = arith.constant 0 : i32
    return %c0_i32, %c0_i32_0 : i32, i32
  }
  func.func @transform_2(%arg0: i32) -> (i32, i32) {
    %c0_i32 = arith.constant 0 : i32
    %c0_i32_0 = arith.constant 0 : i32
    %c0_i32_1 = arith.constant 0 : i32
    return %c0_i32, %c0_i32_0 : i32, i32
  }
  func.func @transform_3(%arg0: i32) -> (i32, i32) {
    %c0_i32 = arith.constant 0 : i32
    %c0_i32_0 = arith.constant 0 : i32
    %c0_i32_1 = arith.constant 0 : i32
    return %c0_i32, %c0_i32_0 : i32, i32
  }
  func.func @transform_4(%arg0: i32) -> (i32, i32) {
    %c0_i32 = arith.constant 0 : i32
    %c0_i32_0 = arith.constant 0 : i32
    %c0_i32_1 = arith.constant 0 : i32
    return %c0_i32, %c0_i32_0 : i32, i32
  }
  func.func @transform_5(%arg0: i32) -> (i32, i32) {
    %c0_i32 = arith.constant 0 : i32
    %c0_i32_0 = arith.constant 0 : i32
    %c0_i32_1 = arith.constant 0 : i32
    return %c0_i32, %c0_i32_0 : i32, i32
  }
  func.func @transform_6(%arg0: i32) -> (i32, i32) {
    %c0_i32 = arith.constant 0 : i32
    %c0_i32_0 = arith.constant 0 : i32
    %c0_i32_1 = arith.constant 0 : i32
    return %c0_i32, %c0_i32_0 : i32, i32
  }
  func.func @transform_7(%arg0: i32) -> (i32, i32) {
    %c0_i32 = arith.constant 0 : i32
    %c0_i32_0 = arith.constant 0 : i32
    %c0_i32_1 = arith.constant 0 : i32
    return %c0_i32, %c0_i32_0 : i32, i32
  }
  func.func @transform_8(%arg0: i32) -> (i32, i32) {
    %c0_i32 = arith.constant 0 : i32
    %c0_i32_0 = arith.constant 0 : i32
    %c0_i32_1 = arith.constant 0 : i32
    return %c0_i32, %c0_i32_0 : i32, i32
  }
  func.func @transform_9(%arg0: i32) -> (i32, i32) {
    %c0_i32 = arith.constant 0 : i32
    %c0_i32_0 = arith.constant 0 : i32
    return %arg0, %c0_i32 : i32, i32
  }
}

</mosaic_0001>

<llo_original>
// kernel: mlp_forward.1
$region0: #{mlp_forward.1}
  #allocation0 [shape = 'u32[]', space=smem, size = 0x4, offset = 0x4, fixed_abs, tag = 'smem constant byte address 0x4 - core index']
  #allocation1 [shape = 'u32[144,128]{1,0:T(1,128)}', space=vmem, size = 0x12000, scoped, tag = 'internal scratch']
  %s0 = inlined_call_operand.vmem [shape: bf16[16,128], index: 0, kind: input, shape index: {}]
  %s1 = inlined_call_operand.hbm [shape: bf16[128,512], index: 1, kind: input, shape index: {}]
  %s2 = inlined_call_operand.vmem [shape: f32[1,512], index: 2, kind: input, shape index: {}]
  %s3 = inlined_call_operand.hbm [shape: bf16[512,512], index: 3, kind: input, shape index: {}]
  %s4 = inlined_call_operand.vmem [shape: f32[1,512], index: 4, kind: input, shape index: {}]
  %s5 = inlined_call_operand.hbm [shape: bf16[512,512], index: 5, kind: input, shape index: {}]
  %s6 = inlined_call_operand.vmem [shape: f32[1,512], index: 6, kind: input, shape index: {}]
  %s7 = inlined_call_operand.hbm [shape: bf16[512,128], index: 7, kind: input, shape index: {}]
  %s8 = inlined_call_operand.vmem [shape: f32[1,128], index: 8, kind: input, shape index: {}]
  %s9 = inlined_call_operand.vmem [shape: f32[16,128], index: 9, kind: output, shape index: {}]
  %s10 = sld [smem:[#allocation0]]
  $region62: #{mlp_forward.1} parent=0
    _
  %s12 = ssub.s32 1, %s10
  %s13 = scalar_select 0, %s12, %s10
  $region1: #{mlp_forward.1} parent=0
    #allocation2 [shape = 'u8[131072]{0}', space=vmem, size = 0x20000, scoped, tag = 'input window, operand 1, single buffered']
    #allocation3 [shape = 's32[1]{0}', space=sflag, size = 0x4, scoped, tag = 'scoped memory for mlp_forward.1']
    #allocation4 [shape = 'u8[524288]{0}', space=vmem, size = 0x80000, scoped, tag = 'input window, operand 3, single buffered']
    #allocation5 [shape = 's32[1]{0}', space=sflag, size = 0x4, scoped, tag = 'scoped memory for mlp_forward.1']
    #allocation6 [shape = 'u8[524288]{0}', space=vmem, size = 0x80000, scoped, tag = 'input window, operand 5, single buffered']
    #allocation7 [shape = 'u8[131072]{0}', space=vmem, size = 0x20000, scoped, tag = 'input window, operand 7, single buffered']
    #allocation8 [shape = 's32[1]{0}', space=sflag, size = 0x4, scoped, tag = 'scoped memory for mlp_forward.1']
    %14 = vsyncpa [#allocation3], 0
    %15 = vsyncpa [#allocation5], 0
    %16 = vsyncpa [#allocation8], 0
    // Predicated region
    $region2: #{mlp_forward.1} parent=1 // pred_check
      _
    $region3: #{mlp_forward.1} parent=1 // pred_check_branch
      %18 = sbr.rel (0) target = $region5
    $region4: #{mlp_forward.1} parent=1 // pred_region
      _
    $region5: #{mlp_forward.1} parent=1 // pred_fallthru
      _
    // Predicated region
    $region6: #{mlp_forward.1} parent=1 // pred_check
      _
    $region7: #{mlp_forward.1} parent=1 // pred_check_branch
      %20 = sbr.rel (0) target = $region9
    $region8: #{mlp_forward.1} parent=1 // pred_region
      %s22 = ssub.s32 4096, 4096
      %23 = vsyncadd [#allocation3], %s22
      %s24 = sshll.u32 [#allocation2], 4
      %s25 = int_to_ptr.vmem [resolvable:$true] %s24
      %30 = dma.hbm_to_vmem [thread:$0]  %s1, 4096, %s25, [#allocation3], 256, 256, 16
    $region9: #{mlp_forward.1} parent=1 // pred_fallthru
      _
    // Predicated region
    $region10: #{mlp_forward.1} parent=1 // pred_check
      _
    $region11: #{mlp_forward.1} parent=1 // pred_check_branch
      %32 = sbr.rel (0) target = $region13
    $region12: #{mlp_forward.1} parent=1 // pred_region
      _
    $region13: #{mlp_forward.1} parent=1 // pred_fallthru
      _
    // Predicated region
    $region14: #{mlp_forward.1} parent=1 // pred_check
      _
    $region15: #{mlp_forward.1} parent=1 // pred_check_branch
      %34 = sbr.rel (0) target = $region17
    $region16: #{mlp_forward.1} parent=1 // pred_region
      %s36 = ssub.s32 16384, 16384
      %37 = vsyncadd [#allocation5], %s36
      %s38 = sshll.u32 [#allocation4], 4
      %s39 = int_to_ptr.vmem [resolvable:$true] %s38
      %44 = dma.hbm_to_vmem [thread:$0]  %s3, 16384, %s39, [#allocation5], 256, 256, 16
    $region17: #{mlp_forward.1} parent=1 // pred_fallthru
      _
    // Predicated region
    $region18: #{mlp_forward.1} parent=1 // pred_check
      _
    $region19: #{mlp_forward.1} parent=1 // pred_check_branch
      %46 = sbr.rel (0) target = $region21
    $region20: #{mlp_forward.1} parent=1 // pred_region
      _
    $region21: #{mlp_forward.1} parent=1 // pred_fallthru
      _
    // Predicated region
    $region22: #{mlp_forward.1} parent=1 // pred_check
      _
    $region23: #{mlp_forward.1} parent=1 // pred_check_branch
      %48 = sbr.rel (0) target = $region25
    $region24: #{mlp_forward.1} parent=1 // pred_region
      %s50 = ssub.s32 16384, 16384
      %51 = vsyncadd [#allocation5], %s50
      %s52 = sshll.u32 [#allocation6], 4
      %s53 = int_to_ptr.vmem [resolvable:$true] %s52
      %58 = dma.hbm_to_vmem [thread:$0]  %s5, 16384, %s53, [#allocation5], 256, 256, 16
    $region25: #{mlp_forward.1} parent=1 // pred_fallthru
      _
    // Predicated region
    $region26: #{mlp_forward.1} parent=1 // pred_check
      _
    $region27: #{mlp_forward.1} parent=1 // pred_check_branch
      %60 = sbr.rel (0) target = $region29
    $region28: #{mlp_forward.1} parent=1 // pred_region
      _
    $region29: #{mlp_forward.1} parent=1 // pred_fallthru
      _
    // Predicated region
    $region30: #{mlp_forward.1} parent=1 // pred_check
      _
    $region31: #{mlp_forward.1} parent=1 // pred_check_branch
      %62 = sbr.rel (0) target = $region33
    $region32: #{mlp_forward.1} parent=1 // pred_region
      %s64 = ssub.s32 4096, 4096
      %65 = vsyncadd [#allocation8], %s64
      %s66 = sshll.u32 [#allocation7], 4
      %s67 = int_to_ptr.vmem [resolvable:$true] %s66
      %72 = dma.hbm_to_vmem [thread:$0]  %s7, 4096, %s67, [#allocation8], 64, 64, 4
    $region33: #{mlp_forward.1} parent=1 // pred_fallthru
      _
    // Predicated region
    $region34: #{mlp_forward.1} parent=1 // pred_check
      _
    $region35: #{mlp_forward.1} parent=1 // pred_check_branch
      %74 = sbr.rel (0) target = $region37
    $region36: #{mlp_forward.1} parent=1 // pred_region
      _
    $region37: #{mlp_forward.1} parent=1 // pred_fallthru
      _
    // Predicated region
    $region38: #{mlp_forward.1} parent=1 // pred_check
      _
    $region39: #{mlp_forward.1} parent=1 // pred_check_branch
      %76 = sbr.rel (0) target = $region41
    $region40: #{mlp_forward.1} parent=1 // pred_region
      %77 = dma.done [#allocation3], 4096
    $region41: #{mlp_forward.1} parent=1 // pred_fallthru
      _
    // Predicated region
    $region42: #{mlp_forward.1} parent=1 // pred_check
      _
    $region43: #{mlp_forward.1} parent=1 // pred_check_branch
      %79 = sbr.rel (0) target = $region45
    $region44: #{mlp_forward.1} parent=1 // pred_region
      %80 = dma.done [#allocation5], 16384
    $region45: #{mlp_forward.1} parent=1 // pred_fallthru
      _
    // Predicated region
    $region46: #{mlp_forward.1} parent=1 // pred_check
      _
    $region47: #{mlp_forward.1} parent=1 // pred_check_branch
      %82 = sbr.rel (0) target = $region49
    $region48: #{mlp_forward.1} parent=1 // pred_region
      %83 = dma.done [#allocation5], 16384
    $region49: #{mlp_forward.1} parent=1 // pred_fallthru
      _
    // Predicated region
    $region50: #{mlp_forward.1} parent=1 // pred_check
      _
    $region51: #{mlp_forward.1} parent=1 // pred_check_branch
      %85 = sbr.rel (0) target = $region53
    $region52: #{mlp_forward.1} parent=1 // pred_region
      %86 = dma.done [#allocation8], 4096
    $region53: #{mlp_forward.1} parent=1 // pred_fallthru
      _
    %v88 = vld [vmem:[%s0] sm:$0xf]
    %v89 = vld [vmem:[%s0 + $0x4] sm:$0xf]
    %v90 = vld [vmem:[#allocation2] sm:$0xff]
    %v91 = vld [vmem:[#allocation2 + $0x8] sm:$0xff]
    %v92 = vld [vmem:[#allocation2 + $0x10] sm:$0xff]
    %v93 = vld [vmem:[#allocation2 + $0x18] sm:$0xff]
    %v94 = vld [vmem:[#allocation2 + $0x20] sm:$0xff]
    %v95 = vld [vmem:[#allocation2 + $0x28] sm:$0xff]
    %v96 = vld [vmem:[#allocation2 + $0x30] sm:$0xff]
    %v97 = vld [vmem:[#allocation2 + $0x38] sm:$0xff]
    %v98 = vld [vmem:[#allocation2 + $0x40] sm:$0xff]
    %v99 = vld [vmem:[#allocation2 + $0x48] sm:$0xff]
    %v100 = vld [vmem:[#allocation2 + $0x50] sm:$0xff]
    %v101 = vld [vmem:[#allocation2 + $0x58] sm:$0xff]
    %v102 = vld [vmem:[#allocation2 + $0x60] sm:$0xff]
    %v103 = vld [vmem:[#allocation2 + $0x68] sm:$0xff]
    %v104 = vld [vmem:[#allocation2 + $0x70] sm:$0xff]
    %v105 = vld [vmem:[#allocation2 + $0x78] sm:$0xff]
    %v106 = vld [vmem:[#allocation2 + $0x80] sm:$0xff]
    %v107 = vld [vmem:[#allocation2 + $0x88] sm:$0xff]
    %v108 = vld [vmem:[#allocation2 + $0x90] sm:$0xff]
    %v109 = vld [vmem:[#allocation2 + $0x98] sm:$0xff]
    %v110 = vld [vmem:[#allocation2 + $0xa0] sm:$0xff]
    %v111 = vld [vmem:[#allocation2 + $0xa8] sm:$0xff]
    %v112 = vld [vmem:[#allocation2 + $0xb0] sm:$0xff]
    %v113 = vld [vmem:[#allocation2 + $0xb8] sm:$0xff]
    %v114 = vld [vmem:[#allocation2 + $0xc0] sm:$0xff]
    %v115 = vld [vmem:[#allocation2 + $0xc8] sm:$0xff]
    %v116 = vld [vmem:[#allocation2 + $0xd0] sm:$0xff]
    %v117 = vld [vmem:[#allocation2 + $0xd8] sm:$0xff]
    %v118 = vld [vmem:[#allocation2 + $0xe0] sm:$0xff]
    %v119 = vld [vmem:[#allocation2 + $0xe8] sm:$0xff]
    %v120 = vld [vmem:[#allocation2 + $0xf0] sm:$0xff]
    %v121 = vld [vmem:[#allocation2 + $0xf8] sm:$0xff]
    %v122 = vld [vmem:[%s2] sm:$0xf]
    %v124 = vlaneseq
    %v125 = vshrl.u32 %v124, 7
    %v126 = vsub.s32 0, %v125
    %v127 = vrot.slane %v122, %v126
    %v128 = vlaneseq
    %v129 = vshrl.u32 %v128, 7
    %v130 = vsub.s32 1, %v129
    %v131 = vrot.slane %v122, %v130
    %v132 = vlaneseq
    %v133 = vshrl.u32 %v132, 7
    %v134 = vsub.s32 2, %v133
    %v135 = vrot.slane %v122, %v134
    %v136 = vlaneseq
    %v137 = vshrl.u32 %v136, 7
    %v138 = vsub.s32 3, %v137
    %v139 = vrot.slane %v122, %v138
    %v146 = vunpack.c.l.b16 %v88
    %v147 = vunpack.c.l.b16 %v89
    %v148 = vpack.c.b16 %v147, %v146
    %v182 = vunpack.c.l.b16 %v90
    %v183 = vunpack.c.h.b16 %v90
    %v184 = vunpack.c.l.b16 %v91
    %v185 = vunpack.c.h.b16 %v91
    %v186 = vunpack.c.l.b16 %v92
    %v187 = vunpack.c.h.b16 %v92
    %v188 = vunpack.c.l.b16 %v93
    %v189 = vunpack.c.h.b16 %v93
    %v190 = vunpack.c.l.b16 %v94
    %v191 = vunpack.c.h.b16 %v94
    %v192 = vunpack.c.l.b16 %v95
    %v193 = vunpack.c.h.b16 %v95
    %v194 = vunpack.c.l.b16 %v96
    %v195 = vunpack.c.h.b16 %v96
    %v196 = vunpack.c.l.b16 %v97
    %v197 = vunpack.c.h.b16 %v97
    %v198 = vunpack.c.l.b16 %v98
    %v199 = vunpack.c.h.b16 %v98
    %v200 = vunpack.c.l.b16 %v99
    %v201 = vunpack.c.h.b16 %v99
    %v202 = vunpack.c.l.b16 %v100
    %v203 = vunpack.c.h.b16 %v100
    %v204 = vunpack.c.l.b16 %v101
    %v205 = vunpack.c.h.b16 %v101
    %v206 = vunpack.c.l.b16 %v102
    %v207 = vunpack.c.h.b16 %v102
    %v208 = vunpack.c.l.b16 %v103
    %v209 = vunpack.c.h.b16 %v103
    %v210 = vunpack.c.l.b16 %v104
    %v211 = vunpack.c.h.b16 %v104
    %v212 = vunpack.c.l.b16 %v105
    %v213 = vunpack.c.h.b16 %v105
    %v214 = vunpack.c.l.b16 %v106
    %v215 = vunpack.c.h.b16 %v106
    %v216 = vunpack.c.l.b16 %v107
    %v217 = vunpack.c.h.b16 %v107
    %v218 = vunpack.c.l.b16 %v108
    %v219 = vunpack.c.h.b16 %v108
    %v220 = vunpack.c.l.b16 %v109
    %v221 = vunpack.c.h.b16 %v109
    %v222 = vunpack.c.l.b16 %v110
    %v223 = vunpack.c.h.b16 %v110
    %v224 = vunpack.c.l.b16 %v111
    %v225 = vunpack.c.h.b16 %v111
    %v226 = vunpack.c.l.b16 %v112
    %v227 = vunpack.c.h.b16 %v112
    %v228 = vunpack.c.l.b16 %v113
    %v229 = vunpack.c.h.b16 %v113
    %v230 = vunpack.c.l.b16 %v114
    %v231 = vunpack.c.h.b16 %v114
    %v232 = vunpack.c.l.b16 %v115
    %v233 = vunpack.c.h.b16 %v115
    %v234 = vunpack.c.l.b16 %v116
    %v235 = vunpack.c.h.b16 %v116
    %v236 = vunpack.c.l.b16 %v117
    %v237 = vunpack.c.h.b16 %v117
    %v238 = vunpack.c.l.b16 %v118
    %v239 = vunpack.c.h.b16 %v118
    %v240 = vunpack.c.l.b16 %v119
    %v241 = vunpack.c.h.b16 %v119
    %v242 = vunpack.c.l.b16 %v120
    %v243 = vunpack.c.h.b16 %v120
    %v244 = vunpack.c.l.b16 %v121
    %v245 = vunpack.c.h.b16 %v121
    %v246 = vpack.c.b16 %v186, %v182
    %v247 = vpack.c.b16 %v187, %v183
    %v248 = vpack.c.b16 %v188, %v184
    %v249 = vpack.c.b16 %v189, %v185
    %v250 = vpack.c.b16 %v194, %v190
    %v251 = vpack.c.b16 %v195, %v191
    %v252 = vpack.c.b16 %v196, %v192
    %v253 = vpack.c.b16 %v197, %v193
    %v254 = vpack.c.b16 %v202, %v198
    %v255 = vpack.c.b16 %v203, %v199
    %v256 = vpack.c.b16 %v204, %v200
    %v257 = vpack.c.b16 %v205, %v201
    %v258 = vpack.c.b16 %v210, %v206
    %v259 = vpack.c.b16 %v211, %v207
    %v260 = vpack.c.b16 %v212, %v208
    %v261 = vpack.c.b16 %v213, %v209
    %v262 = vpack.c.b16 %v218, %v214
    %v263 = vpack.c.b16 %v219, %v215
    %v264 = vpack.c.b16 %v220, %v216
    %v265 = vpack.c.b16 %v221, %v217
    %v266 = vpack.c.b16 %v226, %v222
    %v267 = vpack.c.b16 %v227, %v223
    %v268 = vpack.c.b16 %v228, %v224
    %v269 = vpack.c.b16 %v229, %v225
    %v270 = vpack.c.b16 %v234, %v230
    %v271 = vpack.c.b16 %v235, %v231
    %v272 = vpack.c.b16 %v236, %v232
    %v273 = vpack.c.b16 %v237, %v233
    %v274 = vpack.c.b16 %v242, %v238
    %v275 = vpack.c.b16 %v243, %v239
    %v276 = vpack.c.b16 %v244, %v240
    %v277 = vpack.c.b16 %v245, %v241
    %310 = vmatprep.subr.bf16.mxu0 %v247
    %311 = vmatpush1.bf16.msra.mxu0 %v246
    %312 = vmatprep.subr.bf16.mxu0 %v251
    %313 = vmatpush1.bf16.msra.mxu0 %v250
    %314 = vmatprep.subr.bf16.mxu0 %v255
    %315 = vmatpush1.bf16.msra.mxu0 %v254
    %316 = vmatprep.subr.bf16.mxu0 %v259
    %317 = vmatpush1.bf16.msra.mxu0 %v258
    %318 = vmatprep.subr.bf16.mxu0 %v263
    %319 = vmatpush1.bf16.msra.mxu0 %v262
    %320 = vmatprep.subr.bf16.mxu0 %v267
    %321 = vmatpush1.bf16.msra.mxu0 %v266
    %322 = vmatprep.subr.bf16.mxu0 %v271
    %323 = vmatpush1.bf16.msra.mxu0 %v270
    %324 = vmatprep.subr.bf16.mxu0 %v275
    %325 = vmatpush1.bf16.msra.mxu0 %v274
    %326 = vmatprep.subr.bf16.mxu0 0
    %327 = vmatpush1.bf16.msra.mxu0 0
    %328 = vmatprep.subr.bf16.mxu0 0
    %329 = vmatpush1.bf16.msra.mxu0 0
    %330 = vmatprep.subr.bf16.mxu0 0
    %331 = vmatpush1.bf16.msra.mxu0 0
    %332 = vmatprep.subr.bf16.mxu0 0
    %333 = vmatpush1.bf16.msra.mxu0 0
    %334 = vmatprep.subr.bf16.mxu0 0
    %335 = vmatpush1.bf16.msra.mxu0 0
    %336 = vmatprep.subr.bf16.mxu0 0
    %337 = vmatpush1.bf16.msra.mxu0 0
    %338 = vmatprep.subr.bf16.mxu0 0
    %339 = vmatpush1.bf16.msra.mxu0 0
    %340 = vmatprep.subr.bf16.mxu0 0
    %341 = vmatpush1.bf16.msra.mxu0 0
    %342 = vmatprep.mubr.bf16.mxu0 0
    %343 = vmatmul.mubr.bf16.gmra.mrb[0].mxu0 %v148
    %v344 = vpop.f32.mrb[0].mxu0
    %v345 = vadd.f32 %v127, %v344
    %v346 = vpop.f32.mrb[0].mxu0
    %v347 = vadd.f32 %v131, %v346
    %v348 = vpop.f32.mrb[0].mxu0
    %v349 = vadd.f32 %v127, %v348
    %v350 = vpop.f32.mrb[0].mxu0
    %v351 = vadd.f32 %v131, %v350
    %352 = vdwg.mxu0
    %353 = vmatprep.subr.bf16.mxu0 %v249
    %354 = vmatpush1.bf16.msra.mxu0 %v248
    %355 = vmatprep.subr.bf16.mxu0 %v253
    %356 = vmatpush1.bf16.msra.mxu0 %v252
    %357 = vmatprep.subr.bf16.mxu0 %v257
    %358 = vmatpush1.bf16.msra.mxu0 %v256
    %359 = vmatprep.subr.bf16.mxu0 %v261
    %360 = vmatpush1.bf16.msra.mxu0 %v260
    %361 = vmatprep.subr.bf16.mxu0 %v265
    %362 = vmatpush1.bf16.msra.mxu0 %v264
    %363 = vmatprep.subr.bf16.mxu0 %v269
    %364 = vmatpush1.bf16.msra.mxu0 %v268
    %365 = vmatprep.subr.bf16.mxu0 %v273
    %366 = vmatpush1.bf16.msra.mxu0 %v272
    %367 = vmatprep.subr.bf16.mxu0 %v277
    %368 = vmatpush1.bf16.msra.mxu0 %v276
    %369 = vmatprep.subr.bf16.mxu0 0
    %370 = vmatpush1.bf16.msra.mxu0 0
    %371 = vmatprep.subr.bf16.mxu0 0
    %372 = vmatpush1.bf16.msra.mxu0 0
    %373 = vmatprep.subr.bf16.mxu0 0
    %374 = vmatpush1.bf16.msra.mxu0 0
    %375 = vmatprep.subr.bf16.mxu0 0
    %376 = vmatpush1.bf16.msra.mxu0 0
    %377 = vmatprep.subr.bf16.mxu0 0
    %378 = vmatpush1.bf16.msra.mxu0 0
    %379 = vmatprep.subr.bf16.mxu0 0
    %380 = vmatpush1.bf16.msra.mxu0 0
    %381 = vmatprep.subr.bf16.mxu0 0
    %382 = vmatpush1.bf16.msra.mxu0 0
    %383 = vmatprep.subr.bf16.mxu0 0
    %384 = vmatpush1.bf16.msra.mxu0 0
    %385 = vmatprep.mubr.bf16.mxu0 0
    %386 = vmatmul.mubr.bf16.gmra.mrb[0].mxu0 %v148
    %v387 = vpop.f32.mrb[0].mxu0
    %v388 = vadd.f32 %v135, %v387
    %v389 = vpop.f32.mrb[0].mxu0
    %v390 = vadd.f32 %v139, %v389
    %v391 = vpop.f32.mrb[0].mxu0
    %v392 = vadd.f32 %v135, %v391
    %v393 = vpop.f32.mrb[0].mxu0
    %v394 = vadd.f32 %v139, %v393
    %395 = vdwg.mxu0
    %v396 = vmax.f32 %v345, 0.0
    %v397 = vmax.f32 %v347, 0.0
    %v398 = vmax.f32 %v388, 0.0
    %v399 = vmax.f32 %v390, 0.0
    %v400 = vmax.f32 %v349, 0.0
    %v401 = vmax.f32 %v351, 0.0
    %v402 = vmax.f32 %v392, 0.0
    %v403 = vmax.f32 %v394, 0.0
    %v404 = vpack.c.bf16 %v400, %v396
    %v405 = vpack.c.bf16 %v401, %v397
    %v406 = vpack.c.bf16 %v402, %v398
    %v407 = vpack.c.bf16 %v403, %v399
    %v408 = vld [vmem:[#allocation4] sm:$0xff]
    %v409 = vld [vmem:[#allocation4 + $0x8] sm:$0xff]
    %v410 = vld [vmem:[#allocation4 + $0x10] sm:$0xff]
    %v411 = vld [vmem:[#allocation4 + $0x18] sm:$0xff]
    %v412 = vld [vmem:[#allocation4 + $0x20] sm:$0xff]
    %v413 = vld [vmem:[#allocation4 + $0x28] sm:$0xff]
    %v414 = vld [vmem:[#allocation4 + $0x30] sm:$0xff]
    %v415 = vld [vmem:[#allocation4 + $0x38] sm:$0xff]
    %v416 = vld [vmem:[#allocation4 + $0x40] sm:$0xff]
    %v417 = vld [vmem:[#allocation4 + $0x48] sm:$0xff]
    %v418 = vld [vmem:[#allocation4 + $0x50] sm:$0xff]
    %v419 = vld [vmem:[#allocation4 + $0x58] sm:$0xff]
    %v420 = vld [vmem:[#allocation4 + $0x60] sm:$0xff]
    %v421 = vld [vmem:[#allocation4 + $0x68] sm:$0xff]
    %v422 = vld [vmem:[#allocation4 + $0x70] sm:$0xff]
    %v423 = vld [vmem:[#allocation4 + $0x78] sm:$0xff]
    %v424 = vld [vmem:[#allocation4 + $0x80] sm:$0xff]
    %v425 = vld [vmem:[#allocation4 + $0x88] sm:$0xff]
    %v426 = vld [vmem:[#allocation4 + $0x90] sm:$0xff]
    %v427 = vld [vmem:[#allocation4 + $0x98] sm:$0xff]
    %v428 = vld [vmem:[#allocation4 + $0xa0] sm:$0xff]
    %v429 = vld [vmem:[#allocation4 + $0xa8] sm:$0xff]
    %v430 = vld [vmem:[#allocation4 + $0xb0] sm:$0xff]
    %v431 = vld [vmem:[#allocation4 + $0xb8] sm:$0xff]
    %v432 = vld [vmem:[#allocation4 + $0xc0] sm:$0xff]
    %v433 = vld [vmem:[#allocation4 + $0xc8] sm:$0xff]
    %v434 = vld [vmem:[#allocation4 + $0xd0] sm:$0xff]
    %v435 = vld [vmem:[#allocation4 + $0xd8] sm:$0xff]
    %v436 = vld [vmem:[#allocation4 + $0xe0] sm:$0xff]
    %v437 = vld [vmem:[#allocation4 + $0xe8] sm:$0xff]
    %v438 = vld [vmem:[#allocation4 + $0xf0] sm:$0xff]
    %v439 = vld [vmem:[#allocation4 + $0xf8] sm:$0xff]
    %v440 = vld [vmem:[#allocation4 + $0x100] sm:$0xff]
    %v441 = vld [vmem:[#allocation4 + $0x108] sm:$0xff]
    %v442 = vld [vmem:[#allocation4 + $0x110] sm:$0xff]
    %v443 = vld [vmem:[#allocation4 + $0x118] sm:$0xff]
    %v444 = vld [vmem:[#allocation4 + $0x120] sm:$0xff]
    %v445 = vld [vmem:[#allocation4 + $0x128] sm:$0xff]
    %v446 = vld [vmem:[#allocation4 + $0x130] sm:$0xff]
    %v447 = vld [vmem:[#allocation4 + $0x138] sm:$0xff]
    %v448 = vld [vmem:[#allocation4 + $0x140] sm:$0xff]
    %v449 = vld [vmem:[#allocation4 + $0x148] sm:$0xff]
    %v450 = vld [vmem:[#allocation4 + $0x150] sm:$0xff]
    %v451 = vld [vmem:[#allocation4 + $0x158] sm:$0xff]
    %v452 = vld [vmem:[#allocation4 + $0x160] sm:$0xff]
    %v453 = vld [vmem:[#allocation4 + $0x168] sm:$0xff]
    %v454 = vld [vmem:[#allocation4 + $0x170] sm:$0xff]
    %v455 = vld [vmem:[#allocation4 + $0x178] sm:$0xff]
    %v456 = vld [vmem:[#allocation4 + $0x180] sm:$0xff]
    %v457 = vld [vmem:[#allocation4 + $0x188] sm:$0xff]
    %v458 = vld [vmem:[#allocation4 + $0x190] sm:$0xff]
    %v459 = vld [vmem:[#allocation4 + $0x198] sm:$0xff]
    %v460 = vld [vmem:[#allocation4 + $0x1a0] sm:$0xff]
    %v461 = vld [vmem:[#allocation4 + $0x1a8] sm:$0xff]
    %v462 = vld [vmem:[#allocation4 + $0x1b0] sm:$0xff]
    %v463 = vld [vmem:[#allocation4 + $0x1b8] sm:$0xff]
    %v464 = vld [vmem:[#allocation4 + $0x1c0] sm:$0xff]
    %v465 = vld [vmem:[#allocation4 + $0x1c8] sm:$0xff]
    %v466 = vld [vmem:[#allocation4 + $0x1d0] sm:$0xff]
    %v467 = vld [vmem:[#allocation4 + $0x1d8] sm:$0xff]
    %v468 = vld [vmem:[#allocation4 + $0x1e0] sm:$0xff]
    %v469 = vld [vmem:[#allocation4 + $0x1e8] sm:$0xff]
    %v470 = vld [vmem:[#allocation4 + $0x1f0] sm:$0xff]
    %v471 = vld [vmem:[#allocation4 + $0x1f8] sm:$0xff]
    %v472 = vld [vmem:[#allocation4 + $0x200] sm:$0xff]
    %v473 = vld [vmem:[#allocation4 + $0x208] sm:$0xff]
    %v474 = vld [vmem:[#allocation4 + $0x210] sm:$0xff]
    %v475 = vld [vmem:[#allocation4 + $0x218] sm:$0xff]
    %v476 = vld [vmem:[#allocation4 + $0x220] sm:$0xff]
    %v477 = vld [vmem:[#allocation4 + $0x228] sm:$0xff]
    %v478 = vld [vmem:[#allocation4 + $0x230] sm:$0xff]
    %v479 = vld [vmem:[#allocation4 + $0x238] sm:$0xff]
    %v480 = vld [vmem:[#allocation4 + $0x240] sm:$0xff]
    %v481 = vld [vmem:[#allocation4 + $0x248] sm:$0xff]
    %v482 = vld [vmem:[#allocation4 + $0x250] sm:$0xff]
    %v483 = vld [vmem:[#allocation4 + $0x258] sm:$0xff]
    %v484 = vld [vmem:[#allocation4 + $0x260] sm:$0xff]
    %v485 = vld [vmem:[#allocation4 + $0x268] sm:$0xff]
    %v486 = vld [vmem:[#allocation4 + $0x270] sm:$0xff]
    %v487 = vld [vmem:[#allocation4 + $0x278] sm:$0xff]
    %v488 = vld [vmem:[#allocation4 + $0x280] sm:$0xff]
    %v489 = vld [vmem:[#allocation4 + $0x288] sm:$0xff]
    %v490 = vld [vmem:[#allocation4 + $0x290] sm:$0xff]
    %v491 = vld [vmem:[#allocation4 + $0x298] sm:$0xff]
    %v492 = vld [vmem:[#allocation4 + $0x2a0] sm:$0xff]
    %v493 = vld [vmem:[#allocation4 + $0x2a8] sm:$0xff]
    %v494 = vld [vmem:[#allocation4 + $0x2b0] sm:$0xff]
    %v495 = vld [vmem:[#allocation4 + $0x2b8] sm:$0xff]
    %v496 = vld [vmem:[#allocation4 + $0x2c0] sm:$0xff]
    %v497 = vld [vmem:[#allocation4 + $0x2c8] sm:$0xff]
    %v498 = vld [vmem:[#allocation4 + $0x2d0] sm:$0xff]
    %v499 = vld [vmem:[#allocation4 + $0x2d8] sm:$0xff]
    %v500 = vld [vmem:[#allocation4 + $0x2e0] sm:$0xff]
    %v501 = vld [vmem:[#allocation4 + $0x2e8] sm:$0xff]
    %v502 = vld [vmem:[#allocation4 + $0x2f0] sm:$0xff]
    %v503 = vld [vmem:[#allocation4 + $0x2f8] sm:$0xff]
    %v504 = vld [vmem:[#allocation4 + $0x300] sm:$0xff]
    %v505 = vld [vmem:[#allocation4 + $0x308] sm:$0xff]
    %v506 = vld [vmem:[#allocation4 + $0x310] sm:$0xff]
    %v507 = vld [vmem:[#allocation4 + $0x318] sm:$0xff]
    %v508 = vld [vmem:[#allocation4 + $0x320] sm:$0xff]
    %v509 = vld [vmem:[#allocation4 + $0x328] sm:$0xff]
    %v510 = vld [vmem:[#allocation4 + $0x330] sm:$0xff]
    %v511 = vld [vmem:[#allocation4 + $0x338] sm:$0xff]
    %v512 = vld [vmem:[#allocation4 + $0x340] sm:$0xff]
    %v513 = vld [vmem:[#allocation4 + $0x348] sm:$0xff]
    %v514 = vld [vmem:[#allocation4 + $0x350] sm:$0xff]
    %v515 = vld [vmem:[#allocation4 + $0x358] sm:$0xff]
    %v516 = vld [vmem:[#allocation4 + $0x360] sm:$0xff]
    %v517 = vld [vmem:[#allocation4 + $0x368] sm:$0xff]
    %v518 = vld [vmem:[#allocation4 + $0x370] sm:$0xff]
    %v519 = vld [vmem:[#allocation4 + $0x378] sm:$0xff]
    %v520 = vld [vmem:[#allocation4 + $0x380] sm:$0xff]
    %v521 = vld [vmem:[#allocation4 + $0x388] sm:$0xff]
    %v522 = vld [vmem:[#allocation4 + $0x390] sm:$0xff]
    %v523 = vld [vmem:[#allocation4 + $0x398] sm:$0xff]
    %v524 = vld [vmem:[#allocation4 + $0x3a0] sm:$0xff]
    %v525 = vld [vmem:[#allocation4 + $0x3a8] sm:$0xff]
    %v526 = vld [vmem:[#allocation4 + $0x3b0] sm:$0xff]
    %v527 = vld [vmem:[#allocation4 + $0x3b8] sm:$0xff]
    %v528 = vld [vmem:[#allocation4 + $0x3c0] sm:$0xff]
    %v529 = vld [vmem:[#allocation4 + $0x3c8] sm:$0xff]
    %v530 = vld [vmem:[#allocation4 + $0x3d0] sm:$0xff]
    %v531 = vld [vmem:[#allocation4 + $0x3d8] sm:$0xff]
    %v532 = vld [vmem:[#allocation4 + $0x3e0] sm:$0xff]
    %v533 = vld [vmem:[#allocation4 + $0x3e8] sm:$0xff]
    %v534 = vld [vmem:[#allocation4 + $0x3f0] sm:$0xff]
    %v535 = vld [vmem:[#allocation4 + $0x3f8] sm:$0xff]
    %v536 = vld [vmem:[%s4] sm:$0xf]
    %v538 = vlaneseq
    %v539 = vshrl.u32 %v538, 7
    %v540 = vsub.s32 0, %v539
    %v541 = vrot.slane %v536, %v540
    %v542 = vlaneseq
    %v543 = vshrl.u32 %v542, 7
    %v544 = vsub.s32 1, %v543
    %v545 = vrot.slane %v536, %v544
    %v546 = vlaneseq
    %v547 = vshrl.u32 %v546, 7
    %v548 = vsub.s32 2, %v547
    %v549 = vrot.slane %v536, %v548
    %v550 = vlaneseq
    %v551 = vshrl.u32 %v550, 7
    %v552 = vsub.s32 3, %v551
    %v553 = vrot.slane %v536, %v552
    %v686 = vunpack.c.l.b16 %v408
    %v687 = vunpack.c.h.b16 %v408
    %v688 = vunpack.c.l.b16 %v409
    %v689 = vunpack.c.h.b16 %v409
    %v690 = vunpack.c.l.b16 %v410
    %v691 = vunpack.c.h.b16 %v410
    %v692 = vunpack.c.l.b16 %v411
    %v693 = vunpack.c.h.b16 %v411
    %v694 = vunpack.c.l.b16 %v412
    %v695 = vunpack.c.h.b16 %v412
    %v696 = vunpack.c.l.b16 %v413
    %v697 = vunpack.c.h.b16 %v413
    %v698 = vunpack.c.l.b16 %v414
    %v699 = vunpack.c.h.b16 %v414
    %v700 = vunpack.c.l.b16 %v415
    %v701 = vunpack.c.h.b16 %v415
    %v702 = vunpack.c.l.b16 %v416
    %v703 = vunpack.c.h.b16 %v416
    %v704 = vunpack.c.l.b16 %v417
    %v705 = vunpack.c.h.b16 %v417
    %v706 = vunpack.c.l.b16 %v418
    %v707 = vunpack.c.h.b16 %v418
    %v708 = vunpack.c.l.b16 %v419
    %v709 = vunpack.c.h.b16 %v419
    %v710 = vunpack.c.l.b16 %v420
    %v711 = vunpack.c.h.b16 %v420
    %v712 = vunpack.c.l.b16 %v421
    %v713 = vunpack.c.h.b16 %v421
    %v714 = vunpack.c.l.b16 %v422
    %v715 = vunpack.c.h.b16 %v422
    %v716 = vunpack.c.l.b16 %v423
    %v717 = vunpack.c.h.b16 %v423
    %v718 = vunpack.c.l.b16 %v424
    %v719 = vunpack.c.h.b16 %v424
    %v720 = vunpack.c.l.b16 %v425
    %v721 = vunpack.c.h.b16 %v425
    %v722 = vunpack.c.l.b16 %v426
    %v723 = vunpack.c.h.b16 %v426
    %v724 = vunpack.c.l.b16 %v427
    %v725 = vunpack.c.h.b16 %v427
    %v726 = vunpack.c.l.b16 %v428
    %v727 = vunpack.c.h.b16 %v428
    %v728 = vunpack.c.l.b16 %v429
    %v729 = vunpack.c.h.b16 %v429
    %v730 = vunpack.c.l.b16 %v430
    %v731 = vunpack.c.h.b16 %v430
    %v732 = vunpack.c.l.b16 %v431
    %v733 = vunpack.c.h.b16 %v431
    %v734 = vunpack.c.l.b16 %v432
    %v735 = vunpack.c.h.b16 %v432
    %v736 = vunpack.c.l.b16 %v433
    %v737 = vunpack.c.h.b16 %v433
    %v738 = vunpack.c.l.b16 %v434
    %v739 = vunpack.c.h.b16 %v434
    %v740 = vunpack.c.l.b16 %v435
    %v741 = vunpack.c.h.b16 %v435
    %v742 = vunpack.c.l.b16 %v436
    %v743 = vunpack.c.h.b16 %v436
    %v744 = vunpack.c.l.b16 %v437
    %v745 = vunpack.c.h.b16 %v437
    %v746 = vunpack.c.l.b16 %v438
    %v747 = vunpack.c.h.b16 %v438
    %v748 = vunpack.c.l.b16 %v439
    %v749 = vunpack.c.h.b16 %v439
    %v750 = vunpack.c.l.b16 %v440
    %v751 = vunpack.c.h.b16 %v440
    %v752 = vunpack.c.l.b16 %v441
    %v753 = vunpack.c.h.b16 %v441
    %v754 = vunpack.c.l.b16 %v442
    %v755 = vunpack.c.h.b16 %v442
    %v756 = vunpack.c.l.b16 %v443
    %v757 = vunpack.c.h.b16 %v443
    %v758 = vunpack.c.l.b16 %v444
    %v759 = vunpack.c.h.b16 %v444
    %v760 = vunpack.c.l.b16 %v445
    %v761 = vunpack.c.h.b16 %v445
    %v762 = vunpack.c.l.b16 %v446
    %v763 = vunpack.c.h.b16 %v446
    %v764 = vunpack.c.l.b16 %v447
    %v765 = vunpack.c.h.b16 %v447
    %v766 = vunpack.c.l.b16 %v448
    %v767 = vunpack.c.h.b16 %v448
    %v768 = vunpack.c.l.b16 %v449
    %v769 = vunpack.c.h.b16 %v449
    %v770 = vunpack.c.l.b16 %v450
    %v771 = vunpack.c.h.b16 %v450
    %v772 = vunpack.c.l.b16 %v451
    %v773 = vunpack.c.h.b16 %v451
    %v774 = vunpack.c.l.b16 %v452
    %v775 = vunpack.c.h.b16 %v452
    %v776 = vunpack.c.l.b16 %v453
    %v777 = vunpack.c.h.b16 %v453
    %v778 = vunpack.c.l.b16 %v454
    %v779 = vunpack.c.h.b16 %v454
    %v780 = vunpack.c.l.b16 %v455
    %v781 = vunpack.c.h.b16 %v455
    %v782 = vunpack.c.l.b16 %v456
    %v783 = vunpack.c.h.b16 %v456
    %v784 = vunpack.c.l.b16 %v457
    %v785 = vunpack.c.h.b16 %v457
    %v786 = vunpack.c.l.b16 %v458
    %v787 = vunpack.c.h.b16 %v458
    %v788 = vunpack.c.l.b16 %v459
    %v789 = vunpack.c.h.b16 %v459
    %v790 = vunpack.c.l.b16 %v460
    %v791 = vunpack.c.h.b16 %v460
    %v792 = vunpack.c.l.b16 %v461
    %v793 = vunpack.c.h.b16 %v461
    %v794 = vunpack.c.l.b16 %v462
    %v795 = vunpack.c.h.b16 %v462
    %v796 = vunpack.c.l.b16 %v463
    %v797 = vunpack.c.h.b16 %v463
    %v798 = vunpack.c.l.b16 %v464
    %v799 = vunpack.c.h.b16 %v464
    %v800 = vunpack.c.l.b16 %v465
    %v801 = vunpack.c.h.b16 %v465
    %v802 = vunpack.c.l.b16 %v466
    %v803 = vunpack.c.h.b16 %v466
    %v804 = vunpack.c.l.b16 %v467
    %v805 = vunpack.c.h.b16 %v467
    %v806 = vunpack.c.l.b16 %v468
    %v807 = vunpack.c.h.b16 %v468
    %v808 = vunpack.c.l.b16 %v469
    %v809 = vunpack.c.h.b16 %v469
    %v810 = vunpack.c.l.b16 %v470
    %v811 = vunpack.c.h.b16 %v470
    %v812 = vunpack.c.l.b16 %v471
    %v813 = vunpack.c.h.b16 %v471
    %v814 = vunpack.c.l.b16 %v472
    %v815 = vunpack.c.h.b16 %v472
    %v816 = vunpack.c.l.b16 %v473
    %v817 = vunpack.c.h.b16 %v473
    %v818 = vunpack.c.l.b16 %v474
    %v819 = vunpack.c.h.b16 %v474
    %v820 = vunpack.c.l.b16 %v475
    %v821 = vunpack.c.h.b16 %v475
    %v822 = vunpack.c.l.b16 %v476
    %v823 = vunpack.c.h.b16 %v476
    %v824 = vunpack.c.l.b16 %v477
    %v825 = vunpack.c.h.b16 %v477
    %v826 = vunpack.c.l.b16 %v478
    %v827 = vunpack.c.h.b16 %v478
    %v828 = vunpack.c.l.b16 %v479
    %v829 = vunpack.c.h.b16 %v479
    %v830 = vunpack.c.l.b16 %v480
    %v831 = vunpack.c.h.b16 %v480
    %v832 = vunpack.c.l.b16 %v481
    %v833 = vunpack.c.h.b16 %v481
    %v834 = vunpack.c.l.b16 %v482
    %v835 = vunpack.c.h.b16 %v482
    %v836 = vunpack.c.l.b16 %v483
    %v837 = vunpack.c.h.b16 %v483
    %v838 = vunpack.c.l.b16 %v484
    %v839 = vunpack.c.h.b16 %v484
    %v840 = vunpack.c.l.b16 %v485
    %v841 = vunpack.c.h.b16 %v485
    %v842 = vunpack.c.l.b16 %v486
    %v843 = vunpack.c.h.b16 %v486
    %v844 = vunpack.c.l.b16 %v487
    %v845 = vunpack.c.h.b16 %v487
    %v846 = vunpack.c.l.b16 %v488
    %v847 = vunpack.c.h.b16 %v488
    %v848 = vunpack.c.l.b16 %v489
    %v849 = vunpack.c.h.b16 %v489
    %v850 = vunpack.c.l.b16 %v490
    %v851 = vunpack.c.h.b16 %v490
    %v852 = vunpack.c.l.b16 %v491
    %v853 = vunpack.c.h.b16 %v491
    %v854 = vunpack.c.l.b16 %v492
    %v855 = vunpack.c.h.b16 %v492
    %v856 = vunpack.c.l.b16 %v493
    %v857 = vunpack.c.h.b16 %v493
    %v858 = vunpack.c.l.b16 %v494
    %v859 = vunpack.c.h.b16 %v494
    %v860 = vunpack.c.l.b16 %v495
    %v861 = vunpack.c.h.b16 %v495
    %v862 = vunpack.c.l.b16 %v496
    %v863 = vunpack.c.h.b16 %v496
    %v864 = vunpack.c.l.b16 %v497
    %v865 = vunpack.c.h.b16 %v497
    %v866 = vunpack.c.l.b16 %v498
    %v867 = vunpack.c.h.b16 %v498
    %v868 = vunpack.c.l.b16 %v499
    %v869 = vunpack.c.h.b16 %v499
    %v870 = vunpack.c.l.b16 %v500
    %v871 = vunpack.c.h.b16 %v500
    %v872 = vunpack.c.l.b16 %v501
    %v873 = vunpack.c.h.b16 %v501
    %v874 = vunpack.c.l.b16 %v502
    %v875 = vunpack.c.h.b16 %v502
    %v876 = vunpack.c.l.b16 %v503
    %v877 = vunpack.c.h.b16 %v503
    %v878 = vunpack.c.l.b16 %v504
    %v879 = vunpack.c.h.b16 %v504
    %v880 = vunpack.c.l.b16 %v505
    %v881 = vunpack.c.h.b16 %v505
    %v882 = vunpack.c.l.b16 %v506
    %v883 = vunpack.c.h.b16 %v506
    %v884 = vunpack.c.l.b16 %v507
    %v885 = vunpack.c.h.b16 %v507
    %v886 = vunpack.c.l.b16 %v508
    %v887 = vunpack.c.h.b16 %v508
    %v888 = vunpack.c.l.b16 %v509
    %v889 = vunpack.c.h.b16 %v509
    %v890 = vunpack.c.l.b16 %v510
    %v891 = vunpack.c.h.b16 %v510
    %v892 = vunpack.c.l.b16 %v511
    %v893 = vunpack.c.h.b16 %v511
    %v894 = vunpack.c.l.b16 %v512
    %v895 = vunpack.c.h.b16 %v512
    %v896 = vunpack.c.l.b16 %v513
    %v897 = vunpack.c.h.b16 %v513
    %v898 = vunpack.c.l.b16 %v514
    %v899 = vunpack.c.h.b16 %v514
    %v900 = vunpack.c.l.b16 %v515
    %v901 = vunpack.c.h.b16 %v515
    %v902 = vunpack.c.l.b16 %v516
    %v903 = vunpack.c.h.b16 %v516
    %v904 = vunpack.c.l.b16 %v517
    %v905 = vunpack.c.h.b16 %v517
    %v906 = vunpack.c.l.b16 %v518
    %v907 = vunpack.c.h.b16 %v518
    %v908 = vunpack.c.l.b16 %v519
    %v909 = vunpack.c.h.b16 %v519
    %v910 = vunpack.c.l.b16 %v520
    %v911 = vunpack.c.h.b16 %v520
    %v912 = vunpack.c.l.b16 %v521
    %v913 = vunpack.c.h.b16 %v521
    %v914 = vunpack.c.l.b16 %v522
    %v915 = vunpack.c.h.b16 %v522
    %v916 = vunpack.c.l.b16 %v523
    %v917 = vunpack.c.h.b16 %v523
    %v918 = vunpack.c.l.b16 %v524
    %v919 = vunpack.c.h.b16 %v524
    %v920 = vunpack.c.l.b16 %v525
    %v921 = vunpack.c.h.b16 %v525
    %v922 = vunpack.c.l.b16 %v526
    %v923 = vunpack.c.h.b16 %v526
    %v924 = vunpack.c.l.b16 %v527
    %v925 = vunpack.c.h.b16 %v527
    %v926 = vunpack.c.l.b16 %v528
    %v927 = vunpack.c.h.b16 %v528
    %v928 = vunpack.c.l.b16 %v529
    %v929 = vunpack.c.h.b16 %v529
    %v930 = vunpack.c.l.b16 %v530
    %v931 = vunpack.c.h.b16 %v530
    %v932 = vunpack.c.l.b16 %v531
    %v933 = vunpack.c.h.b16 %v531
    %v934 = vunpack.c.l.b16 %v532
    %v935 = vunpack.c.h.b16 %v532
    %v936 = vunpack.c.l.b16 %v533
    %v937 = vunpack.c.h.b16 %v533
    %v938 = vunpack.c.l.b16 %v534
    %v939 = vunpack.c.h.b16 %v534
    %v940 = vunpack.c.l.b16 %v535
    %v941 = vunpack.c.h.b16 %v535
    %v942 = vpack.c.b16 %v690, %v686
    %v943 = vpack.c.b16 %v691, %v687
    %v944 = vpack.c.b16 %v692, %v688
    %v945 = vpack.c.b16 %v693, %v689
    %v946 = vpack.c.b16 %v698, %v694
    %v947 = vpack.c.b16 %v699, %v695
    %v948 = vpack.c.b16 %v700, %v696
    %v949 = vpack.c.b16 %v701, %v697
    %v950 = vpack.c.b16 %v706, %v702
    %v951 = vpack.c.b16 %v707, %v703
    %v952 = vpack.c.b16 %v708, %v704
    %v953 = vpack.c.b16 %v709, %v705
    %v954 = vpack.c.b16 %v714, %v710
    %v955 = vpack.c.b16 %v715, %v711
    %v956 = vpack.c.b16 %v716, %v712
    %v957 = vpack.c.b16 %v717, %v713
    %v958 = vpack.c.b16 %v722, %v718
    %v959 = vpack.c.b16 %v723, %v719
    %v960 = vpack.c.b16 %v724, %v720
    %v961 = vpack.c.b16 %v725, %v721
    %v962 = vpack.c.b16 %v730, %v726
    %v963 = vpack.c.b16 %v731, %v727
    %v964 = vpack.c.b16 %v732, %v728
    %v965 = vpack.c.b16 %v733, %v729
    %v966 = vpack.c.b16 %v738, %v734
    %v967 = vpack.c.b16 %v739, %v735
    %v968 = vpack.c.b16 %v740, %v736
    %v969 = vpack.c.b16 %v741, %v737
    %v970 = vpack.c.b16 %v746, %v742
    %v971 = vpack.c.b16 %v747, %v743
    %v972 = vpack.c.b16 %v748, %v744
    %v973 = vpack.c.b16 %v749, %v745
    %v974 = vpack.c.b16 %v754, %v750
    %v975 = vpack.c.b16 %v755, %v751
    %v976 = vpack.c.b16 %v756, %v752
    %v977 = vpack.c.b16 %v757, %v753
    %v978 = vpack.c.b16 %v762, %v758
    %v979 = vpack.c.b16 %v763, %v759
    %v980 = vpack.c.b16 %v764, %v760
    %v981 = vpack.c.b16 %v765, %v761
    %v982 = vpack.c.b16 %v770, %v766
    %v983 = vpack.c.b16 %v771, %v767
    %v984 = vpack.c.b16 %v772, %v768
    %v985 = vpack.c.b16 %v773, %v769
    %v986 = vpack.c.b16 %v778, %v774
    %v987 = vpack.c.b16 %v779, %v775
    %v988 = vpack.c.b16 %v780, %v776
    %v989 = vpack.c.b16 %v781, %v777
    %v990 = vpack.c.b16 %v786, %v782
    %v991 = vpack.c.b16 %v787, %v783
    %v992 = vpack.c.b16 %v788, %v784
    %v993 = vpack.c.b16 %v789, %v785
    %v994 = vpack.c.b16 %v794, %v790
    %v995 = vpack.c.b16 %v795, %v791
    %v996 = vpack.c.b16 %v796, %v792
    %v997 = vpack.c.b16 %v797, %v793
    %v998 = vpack.c.b16 %v802, %v798
    %v999 = vpack.c.b16 %v803, %v799
    %v1000 = vpack.c.b16 %v804, %v800
    %v1001 = vpack.c.b16 %v805, %v801
    %v1002 = vpack.c.b16 %v810, %v806
    %v1003 = vpack.c.b16 %v811, %v807
    %v1004 = vpack.c.b16 %v812, %v808
    %v1005 = vpack.c.b16 %v813, %v809
    %v1006 = vpack.c.b16 %v818, %v814
    %v1007 = vpack.c.b16 %v819, %v815
    %v1008 = vpack.c.b16 %v820, %v816
    %v1009 = vpack.c.b16 %v821, %v817
    %v1010 = vpack.c.b16 %v826, %v822
    %v1011 = vpack.c.b16 %v827, %v823
    %v1012 = vpack.c.b16 %v828, %v824
    %v1013 = vpack.c.b16 %v829, %v825
    %v1014 = vpack.c.b16 %v834, %v830
    %v1015 = vpack.c.b16 %v835, %v831
    %v1016 = vpack.c.b16 %v836, %v832
    %v1017 = vpack.c.b16 %v837, %v833
    %v1018 = vpack.c.b16 %v842, %v838
    %v1019 = vpack.c.b16 %v843, %v839
    %v1020 = vpack.c.b16 %v844, %v840
    %v1021 = vpack.c.b16 %v845, %v841
    %v1022 = vpack.c.b16 %v850, %v846
    %v1023 = vpack.c.b16 %v851, %v847
    %v1024 = vpack.c.b16 %v852, %v848
    %v1025 = vpack.c.b16 %v853, %v849
    %v1026 = vpack.c.b16 %v858, %v854
    %v1027 = vpack.c.b16 %v859, %v855
    %v1028 = vpack.c.b16 %v860, %v856
    %v1029 = vpack.c.b16 %v861, %v857
    %v1030 = vpack.c.b16 %v866, %v862
    %v1031 = vpack.c.b16 %v867, %v863
    %v1032 = vpack.c.b16 %v868, %v864
    %v1033 = vpack.c.b16 %v869, %v865
    %v1034 = vpack.c.b16 %v874, %v870
    %v1035 = vpack.c.b16 %v875, %v871
    %v1036 = vpack.c.b16 %v876, %v872
    %v1037 = vpack.c.b16 %v877, %v873
    %v1038 = vpack.c.b16 %v882, %v878
    %v1039 = vpack.c.b16 %v883, %v879
    %v1040 = vpack.c.b16 %v884, %v880
    %v1041 = vpack.c.b16 %v885, %v881
    %v1042 = vpack.c.b16 %v890, %v886
    %v1043 = vpack.c.b16 %v891, %v887
    %v1044 = vpack.c.b16 %v892, %v888
    %v1045 = vpack.c.b16 %v893, %v889
    %v1046 = vpack.c.b16 %v898, %v894
    %v1047 = vpack.c.b16 %v899, %v895
    %v1048 = vpack.c.b16 %v900, %v896
    %v1049 = vpack.c.b16 %v901, %v897
    %v1050 = vpack.c.b16 %v906, %v902
    %v1051 = vpack.c.b16 %v907, %v903
    %v1052 = vpack.c.b16 %v908, %v904
    %v1053 = vpack.c.b16 %v909, %v905
    %v1054 = vpack.c.b16 %v914, %v910
    %v1055 = vpack.c.b16 %v915, %v911
    %v1056 = vpack.c.b16 %v916, %v912
    %v1057 = vpack.c.b16 %v917, %v913
    %v1058 = vpack.c.b16 %v922, %v918
    %v1059 = vpack.c.b16 %v923, %v919
    %v1060 = vpack.c.b16 %v924, %v920
    %v1061 = vpack.c.b16 %v925, %v921
    %v1062 = vpack.c.b16 %v930, %v926
    %v1063 = vpack.c.b16 %v931, %v927
    %v1064 = vpack.c.b16 %v932, %v928
    %v1065 = vpack.c.b16 %v933, %v929
    %v1066 = vpack.c.b16 %v938, %v934
    %v1067 = vpack.c.b16 %v939, %v935
    %v1068 = vpack.c.b16 %v940, %v936
    %v1069 = vpack.c.b16 %v941, %v937
    %1198 = vmatprep.subr.bf16.mxu0 %v943
    %1199 = vmatpush1.bf16.msra.mxu0 %v942
    %1200 = vmatprep.subr.bf16.mxu0 %v947
    %1201 = vmatpush1.bf16.msra.mxu0 %v946
    %1202 = vmatprep.subr.bf16.mxu0 %v951
    %1203 = vmatpush1.bf16.msra.mxu0 %v950
    %1204 = vmatprep.subr.bf16.mxu0 %v955
    %1205 = vmatpush1.bf16.msra.mxu0 %v954
    %1206 = vmatprep.subr.bf16.mxu0 %v959
    %1207 = vmatpush1.bf16.msra.mxu0 %v958
    %1208 = vmatprep.subr.bf16.mxu0 %v963
    %1209 = vmatpush1.bf16.msra.mxu0 %v962
    %1210 = vmatprep.subr.bf16.mxu0 %v967
    %1211 = vmatpush1.bf16.msra.mxu0 %v966
    %1212 = vmatprep.subr.bf16.mxu0 %v971
    %1213 = vmatpush1.bf16.msra.mxu0 %v970
    %1214 = vmatprep.subr.bf16.mxu0 %v975
    %1215 = vmatpush1.bf16.msra.mxu0 %v974
    %1216 = vmatprep.subr.bf16.mxu0 %v979
    %1217 = vmatpush1.bf16.msra.mxu0 %v978
    %1218 = vmatprep.subr.bf16.mxu0 %v983
    %1219 = vmatpush1.bf16.msra.mxu0 %v982
    %1220 = vmatprep.subr.bf16.mxu0 %v987
    %1221 = vmatpush1.bf16.msra.mxu0 %v986
    %1222 = vmatprep.subr.bf16.mxu0 %v991
    %1223 = vmatpush1.bf16.msra.mxu0 %v990
    %1224 = vmatprep.subr.bf16.mxu0 %v995
    %1225 = vmatpush1.bf16.msra.mxu0 %v994
    %1226 = vmatprep.subr.bf16.mxu0 %v999
    %1227 = vmatpush1.bf16.msra.mxu0 %v998
    %1228 = vmatprep.subr.bf16.mxu0 %v1003
    %1229 = vmatpush1.bf16.msra.mxu0 %v1002
    %1230 = vmatprep.mubr.bf16.mxu0 %v405
    %1231 = vmatmul.mubr.bf16.gmra.mrb[0].mxu0 %v404
    %v1232 = vpop.f32.mrb[0].mxu0
    %v1233 = vadd.f32 %v541, %v1232
    %v1234 = vpop.f32.mrb[0].mxu0
    %v1235 = vadd.f32 %v545, %v1234
    %v1236 = vpop.f32.mrb[0].mxu0
    %v1237 = vadd.f32 %v541, %v1236
    %v1238 = vpop.f32.mrb[0].mxu0
    %v1239 = vadd.f32 %v545, %v1238
    %1240 = vdwg.mxu0
    %1241 = vmatprep.subr.bf16.mxu0 %v1007
    %1242 = vmatpush1.bf16.msra.mxu0 %v1006
    %1243 = vmatprep.subr.bf16.mxu0 %v1011
    %1244 = vmatpush1.bf16.msra.mxu0 %v1010
    %1245 = vmatprep.subr.bf16.mxu0 %v1015
    %1246 = vmatpush1.bf16.msra.mxu0 %v1014
    %1247 = vmatprep.subr.bf16.mxu0 %v1019
    %1248 = vmatpush1.bf16.msra.mxu0 %v1018
    %1249 = vmatprep.subr.bf16.mxu0 %v1023
    %1250 = vmatpush1.bf16.msra.mxu0 %v1022
    %1251 = vmatprep.subr.bf16.mxu0 %v1027
    %1252 = vmatpush1.bf16.msra.mxu0 %v1026
    %1253 = vmatprep.subr.bf16.mxu0 %v1031
    %1254 = vmatpush1.bf16.msra.mxu0 %v1030
    %1255 = vmatprep.subr.bf16.mxu0 %v1035
    %1256 = vmatpush1.bf16.msra.mxu0 %v1034
    %1257 = vmatprep.subr.bf16.mxu0 %v1039
    %1258 = vmatpush1.bf16.msra.mxu0 %v1038
    %1259 = vmatprep.subr.bf16.mxu0 %v1043
    %1260 = vmatpush1.bf16.msra.mxu0 %v1042
    %1261 = vmatprep.subr.bf16.mxu0 %v1047
    %1262 = vmatpush1.bf16.msra.mxu0 %v1046
    %1263 = vmatprep.subr.bf16.mxu0 %v1051
    %1264 = vmatpush1.bf16.msra.mxu0 %v1050
    %1265 = vmatprep.subr.bf16.mxu0 %v1055
    %1266 = vmatpush1.bf16.msra.mxu0 %v1054
    %1267 = vmatprep.subr.bf16.mxu0 %v1059
    %1268 = vmatpush1.bf16.msra.mxu0 %v1058
    %1269 = vmatprep.subr.bf16.mxu0 %v1063
    %1270 = vmatpush1.bf16.msra.mxu0 %v1062
    %1271 = vmatprep.subr.bf16.mxu0 %v1067
    %1272 = vmatpush1.bf16.msra.mxu0 %v1066
    %1273 = vmatprep.mubr.bf16.mxu0 %v407
    %1274 = vmatmul.mubr.bf16.gmra.mrb[0].mxu0 %v406
    %v1275 = vpop.f32.mrb[0].mxu0
    %v1276 = vadd.f32 %v1233, %v1275
    %v1277 = vpop.f32.mrb[0].mxu0
    %v1278 = vadd.f32 %v1235, %v1277
    %v1279 = vpop.f32.mrb[0].mxu0
    %v1280 = vadd.f32 %v1237, %v1279
    %v1281 = vpop.f32.mrb[0].mxu0
    %v1282 = vadd.f32 %v1239, %v1281
    %1283 = vdwg.mxu0
    %1284 = vmatprep.subr.bf16.mxu0 %v945
    %1285 = vmatpush1.bf16.msra.mxu0 %v944
    %1286 = vmatprep.subr.bf16.mxu0 %v949
    %1287 = vmatpush1.bf16.msra.mxu0 %v948
    %1288 = vmatprep.subr.bf16.mxu0 %v953
    %1289 = vmatpush1.bf16.msra.mxu0 %v952
    %1290 = vmatprep.subr.bf16.mxu0 %v957
    %1291 = vmatpush1.bf16.msra.mxu0 %v956
    %1292 = vmatprep.subr.bf16.mxu0 %v961
    %1293 = vmatpush1.bf16.msra.mxu0 %v960
    %1294 = vmatprep.subr.bf16.mxu0 %v965
    %1295 = vmatpush1.bf16.msra.mxu0 %v964
    %1296 = vmatprep.subr.bf16.mxu0 %v969
    %1297 = vmatpush1.bf16.msra.mxu0 %v968
    %1298 = vmatprep.subr.bf16.mxu0 %v973
    %1299 = vmatpush1.bf16.msra.mxu0 %v972
    %1300 = vmatprep.subr.bf16.mxu0 %v977
    %1301 = vmatpush1.bf16.msra.mxu0 %v976
    %1302 = vmatprep.subr.bf16.mxu0 %v981
    %1303 = vmatpush1.bf16.msra.mxu0 %v980
    %1304 = vmatprep.subr.bf16.mxu0 %v985
    %1305 = vmatpush1.bf16.msra.mxu0 %v984
    %1306 = vmatprep.subr.bf16.mxu0 %v989
    %1307 = vmatpush1.bf16.msra.mxu0 %v988
    %1308 = vmatprep.subr.bf16.mxu0 %v993
    %1309 = vmatpush1.bf16.msra.mxu0 %v992
    %1310 = vmatprep.subr.bf16.mxu0 %v997
    %1311 = vmatpush1.bf16.msra.mxu0 %v996
    %1312 = vmatprep.subr.bf16.mxu0 %v1001
    %1313 = vmatpush1.bf16.msra.mxu0 %v1000
    %1314 = vmatprep.subr.bf16.mxu0 %v1005
    %1315 = vmatpush1.bf16.msra.mxu0 %v1004
    %1316 = vmatprep.mubr.bf16.mxu0 %v405
    %1317 = vmatmul.mubr.bf16.gmra.mrb[0].mxu0 %v404
    %v1318 = vpop.f32.mrb[0].mxu0
    %v1319 = vadd.f32 %v549, %v1318
    %v1320 = vpop.f32.mrb[0].mxu0
    %v1321 = vadd.f32 %v553, %v1320
    %v1322 = vpop.f32.mrb[0].mxu0
    %v1323 = vadd.f32 %v549, %v1322
    %v1324 = vpop.f32.mrb[0].mxu0
    %v1325 = vadd.f32 %v553, %v1324
    %1326 = vdwg.mxu0
    %1327 = vmatprep.subr.bf16.mxu0 %v1009
    %1328 = vmatpush1.bf16.msra.mxu0 %v1008
    %1329 = vmatprep.subr.bf16.mxu0 %v1013
    %1330 = vmatpush1.bf16.msra.mxu0 %v1012
    %1331 = vmatprep.subr.bf16.mxu0 %v1017
    %1332 = vmatpush1.bf16.msra.mxu0 %v1016
    %1333 = vmatprep.subr.bf16.mxu0 %v1021
    %1334 = vmatpush1.bf16.msra.mxu0 %v1020
    %1335 = vmatprep.subr.bf16.mxu0 %v1025
    %1336 = vmatpush1.bf16.msra.mxu0 %v1024
    %1337 = vmatprep.subr.bf16.mxu0 %v1029
    %1338 = vmatpush1.bf16.msra.mxu0 %v1028
    %1339 = vmatprep.subr.bf16.mxu0 %v1033
    %1340 = vmatpush1.bf16.msra.mxu0 %v1032
    %1341 = vmatprep.subr.bf16.mxu0 %v1037
    %1342 = vmatpush1.bf16.msra.mxu0 %v1036
    %1343 = vmatprep.subr.bf16.mxu0 %v1041
    %1344 = vmatpush1.bf16.msra.mxu0 %v1040
    %1345 = vmatprep.subr.bf16.mxu0 %v1045
    %1346 = vmatpush1.bf16.msra.mxu0 %v1044
    %1347 = vmatprep.subr.bf16.mxu0 %v1049
    %1348 = vmatpush1.bf16.msra.mxu0 %v1048
    %1349 = vmatprep.subr.bf16.mxu0 %v1053
    %1350 = vmatpush1.bf16.msra.mxu0 %v1052
    %1351 = vmatprep.subr.bf16.mxu0 %v1057
    %1352 = vmatpush1.bf16.msra.mxu0 %v1056
    %1353 = vmatprep.subr.bf16.mxu0 %v1061
    %1354 = vmatpush1.bf16.msra.mxu0 %v1060
    %1355 = vmatprep.subr.bf16.mxu0 %v1065
    %1356 = vmatpush1.bf16.msra.mxu0 %v1064
    %1357 = vmatprep.subr.bf16.mxu0 %v1069
    %1358 = vmatpush1.bf16.msra.mxu0 %v1068
    %1359 = vmatprep.mubr.bf16.mxu0 %v407
    %1360 = vmatmul.mubr.bf16.gmra.mrb[0].mxu0 %v406
    %v1361 = vpop.f32.mrb[0].mxu0
    %v1362 = vadd.f32 %v1319, %v1361
    %v1363 = vpop.f32.mrb[0].mxu0
    %v1364 = vadd.f32 %v1321, %v1363
    %v1365 = vpop.f32.mrb[0].mxu0
    %v1366 = vadd.f32 %v1323, %v1365
    %v1367 = vpop.f32.mrb[0].mxu0
    %v1368 = vadd.f32 %v1325, %v1367
    %1369 = vdwg.mxu0
    %v1370 = vmax.f32 %v1276, 0.0
    %v1371 = vmax.f32 %v1278, 0.0
    %v1372 = vmax.f32 %v1362, 0.0
    %v1373 = vmax.f32 %v1364, 0.0
    %v1374 = vmax.f32 %v1280, 0.0
    %v1375 = vmax.f32 %v1282, 0.0
    %v1376 = vmax.f32 %v1366, 0.0
    %v1377 = vmax.f32 %v1368, 0.0
    %v1378 = vpack.c.bf16 %v1374, %v1370
    %v1379 = vpack.c.bf16 %v1375, %v1371
    %v1380 = vpack.c.bf16 %v1376, %v1372
    %v1381 = vpack.c.bf16 %v1377, %v1373
    %v1382 = vld [vmem:[#allocation6] sm:$0xff]
    %v1383 = vld [vmem:[#allocation6 + $0x8] sm:$0xff]
    %v1384 = vld [vmem:[#allocation6 + $0x10] sm:$0xff]
    %v1385 = vld [vmem:[#allocation6 + $0x18] sm:$0xff]
    %v1386 = vld [vmem:[#allocation6 + $0x20] sm:$0xff]
    %v1387 = vld [vmem:[#allocation6 + $0x28] sm:$0xff]
    %v1388 = vld [vmem:[#allocation6 + $0x30] sm:$0xff]
    %v1389 = vld [vmem:[#allocation6 + $0x38] sm:$0xff]
    %v1390 = vld [vmem:[#allocation6 + $0x40] sm:$0xff]
    %v1391 = vld [vmem:[#allocation6 + $0x48] sm:$0xff]
    %v1392 = vld [vmem:[#allocation6 + $0x50] sm:$0xff]
    %v1393 = vld [vmem:[#allocation6 + $0x58] sm:$0xff]
    %v1394 = vld [vmem:[#allocation6 + $0x60] sm:$0xff]
    %v1395 = vld [vmem:[#allocation6 + $0x68] sm:$0xff]
    %v1396 = vld [vmem:[#allocation6 + $0x70] sm:$0xff]
    %v1397 = vld [vmem:[#allocation6 + $0x78] sm:$0xff]
    %v1398 = vld [vmem:[#allocation6 + $0x80] sm:$0xff]
    %v1399 = vld [vmem:[#allocation6 + $0x88] sm:$0xff]
    %v1400 = vld [vmem:[#allocation6 + $0x90] sm:$0xff]
    %v1401 = vld [vmem:[#allocation6 + $0x98] sm:$0xff]
    %v1402 = vld [vmem:[#allocation6 + $0xa0] sm:$0xff]
    %v1403 = vld [vmem:[#allocation6 + $0xa8] sm:$0xff]
    %v1404 = vld [vmem:[#allocation6 + $0xb0] sm:$0xff]
    %v1405 = vld [vmem:[#allocation6 + $0xb8] sm:$0xff]
    %v1406 = vld [vmem:[#allocation6 + $0xc0] sm:$0xff]
    %v1407 = vld [vmem:[#allocation6 + $0xc8] sm:$0xff]
    %v1408 = vld [vmem:[#allocation6 + $0xd0] sm:$0xff]
    %v1409 = vld [vmem:[#allocation6 + $0xd8] sm:$0xff]
    %v1410 = vld [vmem:[#allocation6 + $0xe0] sm:$0xff]
    %v1411 = vld [vmem:[#allocation6 + $0xe8] sm:$0xff]
    %v1412 = vld [vmem:[#allocation6 + $0xf0] sm:$0xff]
    %v1413 = vld [vmem:[#allocation6 + $0xf8] sm:$0xff]
    %v1414 = vld [vmem:[#allocation6 + $0x100] sm:$0xff]
    %v1415 = vld [vmem:[#allocation6 + $0x108] sm:$0xff]
    %v1416 = vld [vmem:[#allocation6 + $0x110] sm:$0xff]
    %v1417 = vld [vmem:[#allocation6 + $0x118] sm:$0xff]
    %v1418 = vld [vmem:[#allocation6 + $0x120] sm:$0xff]
    %v1419 = vld [vmem:[#allocation6 + $0x128] sm:$0xff]
    %v1420 = vld [vmem:[#allocation6 + $0x130] sm:$0xff]
    %v1421 = vld [vmem:[#allocation6 + $0x138] sm:$0xff]
    %v1422 = vld [vmem:[#allocation6 + $0x140] sm:$0xff]
    %v1423 = vld [vmem:[#allocation6 + $0x148] sm:$0xff]
    %v1424 = vld [vmem:[#allocation6 + $0x150] sm:$0xff]
    %v1425 = vld [vmem:[#allocation6 + $0x158] sm:$0xff]
    %v1426 = vld [vmem:[#allocation6 + $0x160] sm:$0xff]
    %v1427 = vld [vmem:[#allocation6 + $0x168] sm:$0xff]
    %v1428 = vld [vmem:[#allocation6 + $0x170] sm:$0xff]
    %v1429 = vld [vmem:[#allocation6 + $0x178] sm:$0xff]
    %v1430 = vld [vmem:[#allocation6 + $0x180] sm:$0xff]
    %v1431 = vld [vmem:[#allocation6 + $0x188] sm:$0xff]
    %v1432 = vld [vmem:[#allocation6 + $0x190] sm:$0xff]
    %v1433 = vld [vmem:[#allocation6 + $0x198] sm:$0xff]
    %v1434 = vld [vmem:[#allocation6 + $0x1a0] sm:$0xff]
    %v1435 = vld [vmem:[#allocation6 + $0x1a8] sm:$0xff]
    %v1436 = vld [vmem:[#allocation6 + $0x1b0] sm:$0xff]
    %v1437 = vld [vmem:[#allocation6 + $0x1b8] sm:$0xff]
    %v1438 = vld [vmem:[#allocation6 + $0x1c0] sm:$0xff]
    %v1439 = vld [vmem:[#allocation6 + $0x1c8] sm:$0xff]
    %v1440 = vld [vmem:[#allocation6 + $0x1d0] sm:$0xff]
    %v1441 = vld [vmem:[#allocation6 + $0x1d8] sm:$0xff]
    %v1442 = vld [vmem:[#allocation6 + $0x1e0] sm:$0xff]
    %v1443 = vld [vmem:[#allocation6 + $0x1e8] sm:$0xff]
    %v1444 = vld [vmem:[#allocation6 + $0x1f0] sm:$0xff]
    %v1445 = vld [vmem:[#allocation6 + $0x1f8] sm:$0xff]
    %v1446 = vld [vmem:[#allocation6 + $0x200] sm:$0xff]
    %v1447 = vld [vmem:[#allocation6 + $0x208] sm:$0xff]
    %v1448 = vld [vmem:[#allocation6 + $0x210] sm:$0xff]
    %v1449 = vld [vmem:[#allocation6 + $0x218] sm:$0xff]
    %v1450 = vld [vmem:[#allocation6 + $0x220] sm:$0xff]
    %v1451 = vld [vmem:[#allocation6 + $0x228] sm:$0xff]
    %v1452 = vld [vmem:[#allocation6 + $0x230] sm:$0xff]
    %v1453 = vld [vmem:[#allocation6 + $0x238] sm:$0xff]
    %v1454 = vld [vmem:[#allocation6 + $0x240] sm:$0xff]
    %v1455 = vld [vmem:[#allocation6 + $0x248] sm:$0xff]
    %v1456 = vld [vmem:[#allocation6 + $0x250] sm:$0xff]
    %v1457 = vld [vmem:[#allocation6 + $0x258] sm:$0xff]
    %v1458 = vld [vmem:[#allocation6 + $0x260] sm:$0xff]
    %v1459 = vld [vmem:[#allocation6 + $0x268] sm:$0xff]
    %v1460 = vld [vmem:[#allocation6 + $0x270] sm:$0xff]
    %v1461 = vld [vmem:[#allocation6 + $0x278] sm:$0xff]
    %v1462 = vld [vmem:[#allocation6 + $0x280] sm:$0xff]
    %v1463 = vld [vmem:[#allocation6 + $0x288] sm:$0xff]
    %v1464 = vld [vmem:[#allocation6 + $0x290] sm:$0xff]
    %v1465 = vld [vmem:[#allocation6 + $0x298] sm:$0xff]
    %v1466 = vld [vmem:[#allocation6 + $0x2a0] sm:$0xff]
    %v1467 = vld [vmem:[#allocation6 + $0x2a8] sm:$0xff]
    %v1468 = vld [vmem:[#allocation6 + $0x2b0] sm:$0xff]
    %v1469 = vld [vmem:[#allocation6 + $0x2b8] sm:$0xff]
    %v1470 = vld [vmem:[#allocation6 + $0x2c0] sm:$0xff]
    %v1471 = vld [vmem:[#allocation6 + $0x2c8] sm:$0xff]
    %v1472 = vld [vmem:[#allocation6 + $0x2d0] sm:$0xff]
    %v1473 = vld [vmem:[#allocation6 + $0x2d8] sm:$0xff]
    %v1474 = vld [vmem:[#allocation6 + $0x2e0] sm:$0xff]
    %v1475 = vld [vmem:[#allocation6 + $0x2e8] sm:$0xff]
    %v1476 = vld [vmem:[#allocation6 + $0x2f0] sm:$0xff]
    %v1477 = vld [vmem:[#allocation6 + $0x2f8] sm:$0xff]
    %v1478 = vld [vmem:[#allocation6 + $0x300] sm:$0xff]
    %v1479 = vld [vmem:[#allocation6 + $0x308] sm:$0xff]
    %v1480 = vld [vmem:[#allocation6 + $0x310] sm:$0xff]
    %v1481 = vld [vmem:[#allocation6 + $0x318] sm:$0xff]
    %v1482 = vld [vmem:[#allocation6 + $0x320] sm:$0xff]
    %v1483 = vld [vmem:[#allocation6 + $0x328] sm:$0xff]
    %v1484 = vld [vmem:[#allocation6 + $0x330] sm:$0xff]
    %v1485 = vld [vmem:[#allocation6 + $0x338] sm:$0xff]
    %v1486 = vld [vmem:[#allocation6 + $0x340] sm:$0xff]
    %v1487 = vld [vmem:[#allocation6 + $0x348] sm:$0xff]
    %v1488 = vld [vmem:[#allocation6 + $0x350] sm:$0xff]
    %v1489 = vld [vmem:[#allocation6 + $0x358] sm:$0xff]
    %v1490 = vld [vmem:[#allocation6 + $0x360] sm:$0xff]
    %v1491 = vld [vmem:[#allocation6 + $0x368] sm:$0xff]
    %v1492 = vld [vmem:[#allocation6 + $0x370] sm:$0xff]
    %v1493 = vld [vmem:[#allocation6 + $0x378] sm:$0xff]
    %v1494 = vld [vmem:[#allocation6 + $0x380] sm:$0xff]
    %v1495 = vld [vmem:[#allocation6 + $0x388] sm:$0xff]
    %v1496 = vld [vmem:[#allocation6 + $0x390] sm:$0xff]
    %v1497 = vld [vmem:[#allocation6 + $0x398] sm:$0xff]
    %v1498 = vld [vmem:[#allocation6 + $0x3a0] sm:$0xff]
    %v1499 = vld [vmem:[#allocation6 + $0x3a8] sm:$0xff]
    %v1500 = vld [vmem:[#allocation6 + $0x3b0] sm:$0xff]
    %v1501 = vld [vmem:[#allocation6 + $0x3b8] sm:$0xff]
    %v1502 = vld [vmem:[#allocation6 + $0x3c0] sm:$0xff]
    %v1503 = vld [vmem:[#allocation6 + $0x3c8] sm:$0xff]
    %v1504 = vld [vmem:[#allocation6 + $0x3d0] sm:$0xff]
    %v1505 = vld [vmem:[#allocation6 + $0x3d8] sm:$0xff]
    %v1506 = vld [vmem:[#allocation6 + $0x3e0] sm:$0xff]
    %v1507 = vld [vmem:[#allocation6 + $0x3e8] sm:$0xff]
    %v1508 = vld [vmem:[#allocation6 + $0x3f0] sm:$0xff]
    %v1509 = vld [vmem:[#allocation6 + $0x3f8] sm:$0xff]
    %v1510 = vld [vmem:[%s6] sm:$0xf]
    %v1512 = vlaneseq
    %v1513 = vshrl.u32 %v1512, 7
    %v1514 = vsub.s32 0, %v1513
    %v1515 = vrot.slane %v1510, %v1514
    %v1516 = vlaneseq
    %v1517 = vshrl.u32 %v1516, 7
    %v1518 = vsub.s32 1, %v1517
    %v1519 = vrot.slane %v1510, %v1518
    %v1520 = vlaneseq
    %v1521 = vshrl.u32 %v1520, 7
    %v1522 = vsub.s32 2, %v1521
    %v1523 = vrot.slane %v1510, %v1522
    %v1524 = vlaneseq
    %v1525 = vshrl.u32 %v1524, 7
    %v1526 = vsub.s32 3, %v1525
    %v1527 = vrot.slane %v1510, %v1526
    %v1660 = vunpack.c.l.b16 %v1382
    %v1661 = vunpack.c.h.b16 %v1382
    %v1662 = vunpack.c.l.b16 %v1383
    %v1663 = vunpack.c.h.b16 %v1383
    %v1664 = vunpack.c.l.b16 %v1384
    %v1665 = vunpack.c.h.b16 %v1384
    %v1666 = vunpack.c.l.b16 %v1385
    %v1667 = vunpack.c.h.b16 %v1385
    %v1668 = vunpack.c.l.b16 %v1386
    %v1669 = vunpack.c.h.b16 %v1386
    %v1670 = vunpack.c.l.b16 %v1387
    %v1671 = vunpack.c.h.b16 %v1387
    %v1672 = vunpack.c.l.b16 %v1388
    %v1673 = vunpack.c.h.b16 %v1388
    %v1674 = vunpack.c.l.b16 %v1389
    %v1675 = vunpack.c.h.b16 %v1389
    %v1676 = vunpack.c.l.b16 %v1390
    %v1677 = vunpack.c.h.b16 %v1390
    %v1678 = vunpack.c.l.b16 %v1391
    %v1679 = vunpack.c.h.b16 %v1391
    %v1680 = vunpack.c.l.b16 %v1392
    %v1681 = vunpack.c.h.b16 %v1392
    %v1682 = vunpack.c.l.b16 %v1393
    %v1683 = vunpack.c.h.b16 %v1393
    %v1684 = vunpack.c.l.b16 %v1394
    %v1685 = vunpack.c.h.b16 %v1394
    %v1686 = vunpack.c.l.b16 %v1395
    %v1687 = vunpack.c.h.b16 %v1395
    %v1688 = vunpack.c.l.b16 %v1396
    %v1689 = vunpack.c.h.b16 %v1396
    %v1690 = vunpack.c.l.b16 %v1397
    %v1691 = vunpack.c.h.b16 %v1397
    %v1692 = vunpack.c.l.b16 %v1398
    %v1693 = vunpack.c.h.b16 %v1398
    %v1694 = vunpack.c.l.b16 %v1399
    %v1695 = vunpack.c.h.b16 %v1399
    %v1696 = vunpack.c.l.b16 %v1400
    %v1697 = vunpack.c.h.b16 %v1400
    %v1698 = vunpack.c.l.b16 %v1401
    %v1699 = vunpack.c.h.b16 %v1401
    %v1700 = vunpack.c.l.b16 %v1402
    %v1701 = vunpack.c.h.b16 %v1402
    %v1702 = vunpack.c.l.b16 %v1403
    %v1703 = vunpack.c.h.b16 %v1403
    %v1704 = vunpack.c.l.b16 %v1404
    %v1705 = vunpack.c.h.b16 %v1404
    %v1706 = vunpack.c.l.b16 %v1405
    %v1707 = vunpack.c.h.b16 %v1405
    %v1708 = vunpack.c.l.b16 %v1406
    %v1709 = vunpack.c.h.b16 %v1406
    %v1710 = vunpack.c.l.b16 %v1407
    %v1711 = vunpack.c.h.b16 %v1407
    %v1712 = vunpack.c.l.b16 %v1408
    %v1713 = vunpack.c.h.b16 %v1408
    %v1714 = vunpack.c.l.b16 %v1409
    %v1715 = vunpack.c.h.b16 %v1409
    %v1716 = vunpack.c.l.b16 %v1410
    %v1717 = vunpack.c.h.b16 %v1410
    %v1718 = vunpack.c.l.b16 %v1411
    %v1719 = vunpack.c.h.b16 %v1411
    %v1720 = vunpack.c.l.b16 %v1412
    %v1721 = vunpack.c.h.b16 %v1412
    %v1722 = vunpack.c.l.b16 %v1413
    %v1723 = vunpack.c.h.b16 %v1413
    %v1724 = vunpack.c.l.b16 %v1414
    %v1725 = vunpack.c.h.b16 %v1414
    %v1726 = vunpack.c.l.b16 %v1415
    %v1727 = vunpack.c.h.b16 %v1415
    %v1728 = vunpack.c.l.b16 %v1416
    %v1729 = vunpack.c.h.b16 %v1416
    %v1730 = vunpack.c.l.b16 %v1417
    %v1731 = vunpack.c.h.b16 %v1417
    %v1732 = vunpack.c.l.b16 %v1418
    %v1733 = vunpack.c.h.b16 %v1418
    %v1734 = vunpack.c.l.b16 %v1419
    %v1735 = vunpack.c.h.b16 %v1419
    %v1736 = vunpack.c.l.b16 %v1420
    %v1737 = vunpack.c.h.b16 %v1420
    %v1738 = vunpack.c.l.b16 %v1421
    %v1739 = vunpack.c.h.b16 %v1421
    %v1740 = vunpack.c.l.b16 %v1422
    %v1741 = vunpack.c.h.b16 %v1422
    %v1742 = vunpack.c.l.b16 %v1423
    %v1743 = vunpack.c.h.b16 %v1423
    %v1744 = vunpack.c.l.b16 %v1424
    %v1745 = vunpack.c.h.b16 %v1424
    %v1746 = vunpack.c.l.b16 %v1425
    %v1747 = vunpack.c.h.b16 %v1425
    %v1748 = vunpack.c.l.b16 %v1426
    %v1749 = vunpack.c.h.b16 %v1426
    %v1750 = vunpack.c.l.b16 %v1427
    %v1751 = vunpack.c.h.b16 %v1427
    %v1752 = vunpack.c.l.b16 %v1428
    %v1753 = vunpack.c.h.b16 %v1428
    %v1754 = vunpack.c.l.b16 %v1429
    %v1755 = vunpack.c.h.b16 %v1429
    %v1756 = vunpack.c.l.b16 %v1430
    %v1757 = vunpack.c.h.b16 %v1430
    %v1758 = vunpack.c.l.b16 %v1431
    %v1759 = vunpack.c.h.b16 %v1431
    %v1760 = vunpack.c.l.b16 %v1432
    %v1761 = vunpack.c.h.b16 %v1432
    %v1762 = vunpack.c.l.b16 %v1433
    %v1763 = vunpack.c.h.b16 %v1433
    %v1764 = vunpack.c.l.b16 %v1434
    %v1765 = vunpack.c.h.b16 %v1434
    %v1766 = vunpack.c.l.b16 %v1435
    %v1767 = vunpack.c.h.b16 %v1435
    %v1768 = vunpack.c.l.b16 %v1436
    %v1769 = vunpack.c.h.b16 %v1436
    %v1770 = vunpack.c.l.b16 %v1437
    %v1771 = vunpack.c.h.b16 %v1437
    %v1772 = vunpack.c.l.b16 %v1438
    %v1773 = vunpack.c.h.b16 %v1438
    %v1774 = vunpack.c.l.b16 %v1439
    %v1775 = vunpack.c.h.b16 %v1439
    %v1776 = vunpack.c.l.b16 %v1440
    %v1777 = vunpack.c.h.b16 %v1440
    %v1778 = vunpack.c.l.b16 %v1441
    %v1779 = vunpack.c.h.b16 %v1441
    %v1780 = vunpack.c.l.b16 %v1442
    %v1781 = vunpack.c.h.b16 %v1442
    %v1782 = vunpack.c.l.b16 %v1443
    %v1783 = vunpack.c.h.b16 %v1443
    %v1784 = vunpack.c.l.b16 %v1444
    %v1785 = vunpack.c.h.b16 %v1444
    %v1786 = vunpack.c.l.b16 %v1445
    %v1787 = vunpack.c.h.b16 %v1445
    %v1788 = vunpack.c.l.b16 %v1446
    %v1789 = vunpack.c.h.b16 %v1446
    %v1790 = vunpack.c.l.b16 %v1447
    %v1791 = vunpack.c.h.b16 %v1447
    %v1792 = vunpack.c.l.b16 %v1448
    %v1793 = vunpack.c.h.b16 %v1448
    %v1794 = vunpack.c.l.b16 %v1449
    %v1795 = vunpack.c.h.b16 %v1449
    %v1796 = vunpack.c.l.b16 %v1450
    %v1797 = vunpack.c.h.b16 %v1450
    %v1798 = vunpack.c.l.b16 %v1451
    %v1799 = vunpack.c.h.b16 %v1451
    %v1800 = vunpack.c.l.b16 %v1452
    %v1801 = vunpack.c.h.b16 %v1452
    %v1802 = vunpack.c.l.b16 %v1453
    %v1803 = vunpack.c.h.b16 %v1453
    %v1804 = vunpack.c.l.b16 %v1454
    %v1805 = vunpack.c.h.b16 %v1454
    %v1806 = vunpack.c.l.b16 %v1455
    %v1807 = vunpack.c.h.b16 %v1455
    %v1808 = vunpack.c.l.b16 %v1456
    %v1809 = vunpack.c.h.b16 %v1456
    %v1810 = vunpack.c.l.b16 %v1457
    %v1811 = vunpack.c.h.b16 %v1457
    %v1812 = vunpack.c.l.b16 %v1458
    %v1813 = vunpack.c.h.b16 %v1458
    %v1814 = vunpack.c.l.b16 %v1459
    %v1815 = vunpack.c.h.b16 %v1459
    %v1816 = vunpack.c.l.b16 %v1460
    %v1817 = vunpack.c.h.b16 %v1460
    %v1818 = vunpack.c.l.b16 %v1461
    %v1819 = vunpack.c.h.b16 %v1461
    %v1820 = vunpack.c.l.b16 %v1462
    %v1821 = vunpack.c.h.b16 %v1462
    %v1822 = vunpack.c.l.b16 %v1463
    %v1823 = vunpack.c.h.b16 %v1463
    %v1824 = vunpack.c.l.b16 %v1464
    %v1825 = vunpack.c.h.b16 %v1464
    %v1826 = vunpack.c.l.b16 %v1465
    %v1827 = vunpack.c.h.b16 %v1465
    %v1828 = vunpack.c.l.b16 %v1466
    %v1829 = vunpack.c.h.b16 %v1466
    %v1830 = vunpack.c.l.b16 %v1467
    %v1831 = vunpack.c.h.b16 %v1467
    %v1832 = vunpack.c.l.b16 %v1468
    %v1833 = vunpack.c.h.b16 %v1468
    %v1834 = vunpack.c.l.b16 %v1469
    %v1835 = vunpack.c.h.b16 %v1469
    %v1836 = vunpack.c.l.b16 %v1470
    %v1837 = vunpack.c.h.b16 %v1470
    %v1838 = vunpack.c.l.b16 %v1471
    %v1839 = vunpack.c.h.b16 %v1471
    %v1840 = vunpack.c.l.b16 %v1472
    %v1841 = vunpack.c.h.b16 %v1472
    %v1842 = vunpack.c.l.b16 %v1473
    %v1843 = vunpack.c.h.b16 %v1473
    %v1844 = vunpack.c.l.b16 %v1474
    %v1845 = vunpack.c.h.b16 %v1474
    %v1846 = vunpack.c.l.b16 %v1475
    %v1847 = vunpack.c.h.b16 %v1475
    %v1848 = vunpack.c.l.b16 %v1476
    %v1849 = vunpack.c.h.b16 %v1476
    %v1850 = vunpack.c.l.b16 %v1477
    %v1851 = vunpack.c.h.b16 %v1477
    %v1852 = vunpack.c.l.b16 %v1478
    %v1853 = vunpack.c.h.b16 %v1478
    %v1854 = vunpack.c.l.b16 %v1479
    %v1855 = vunpack.c.h.b16 %v1479
    %v1856 = vunpack.c.l.b16 %v1480
    %v1857 = vunpack.c.h.b16 %v1480
    %v1858 = vunpack.c.l.b16 %v1481
    %v1859 = vunpack.c.h.b16 %v1481
    %v1860 = vunpack.c.l.b16 %v1482
    %v1861 = vunpack.c.h.b16 %v1482
    %v1862 = vunpack.c.l.b16 %v1483
    %v1863 = vunpack.c.h.b16 %v1483
    %v1864 = vunpack.c.l.b16 %v1484
    %v1865 = vunpack.c.h.b16 %v1484
    %v1866 = vunpack.c.l.b16 %v1485
    %v1867 = vunpack.c.h.b16 %v1485
    %v1868 = vunpack.c.l.b16 %v1486
    %v1869 = vunpack.c.h.b16 %v1486
    %v1870 = vunpack.c.l.b16 %v1487
    %v1871 = vunpack.c.h.b16 %v1487
    %v1872 = vunpack.c.l.b16 %v1488
    %v1873 = vunpack.c.h.b16 %v1488
    %v1874 = vunpack.c.l.b16 %v1489
    %v1875 = vunpack.c.h.b16 %v1489
    %v1876 = vunpack.c.l.b16 %v1490
    %v1877 = vunpack.c.h.b16 %v1490
    %v1878 = vunpack.c.l.b16 %v1491
    %v1879 = vunpack.c.h.b16 %v1491
    %v1880 = vunpack.c.l.b16 %v1492
    %v1881 = vunpack.c.h.b16 %v1492
    %v1882 = vunpack.c.l.b16 %v1493
    %v1883 = vunpack.c.h.b16 %v1493
    %v1884 = vunpack.c.l.b16 %v1494
    %v1885 = vunpack.c.h.b16 %v1494
    %v1886 = vunpack.c.l.b16 %v1495
    %v1887 = vunpack.c.h.b16 %v1495
    %v1888 = vunpack.c.l.b16 %v1496
    %v1889 = vunpack.c.h.b16 %v1496
    %v1890 = vunpack.c.l.b16 %v1497
    %v1891 = vunpack.c.h.b16 %v1497
    %v1892 = vunpack.c.l.b16 %v1498
    %v1893 = vunpack.c.h.b16 %v1498
    %v1894 = vunpack.c.l.b16 %v1499
    %v1895 = vunpack.c.h.b16 %v1499
    %v1896 = vunpack.c.l.b16 %v1500
    %v1897 = vunpack.c.h.b16 %v1500
    %v1898 = vunpack.c.l.b16 %v1501
    %v1899 = vunpack.c.h.b16 %v1501
    %v1900 = vunpack.c.l.b16 %v1502
    %v1901 = vunpack.c.h.b16 %v1502
    %v1902 = vunpack.c.l.b16 %v1503
    %v1903 = vunpack.c.h.b16 %v1503
    %v1904 = vunpack.c.l.b16 %v1504
    %v1905 = vunpack.c.h.b16 %v1504
    %v1906 = vunpack.c.l.b16 %v1505
    %v1907 = vunpack.c.h.b16 %v1505
    %v1908 = vunpack.c.l.b16 %v1506
    %v1909 = vunpack.c.h.b16 %v1506
    %v1910 = vunpack.c.l.b16 %v1507
    %v1911 = vunpack.c.h.b16 %v1507
    %v1912 = vunpack.c.l.b16 %v1508
    %v1913 = vunpack.c.h.b16 %v1508
    %v1914 = vunpack.c.l.b16 %v1509
    %v1915 = vunpack.c.h.b16 %v1509
    %v1916 = vpack.c.b16 %v1664, %v1660
    %v1917 = vpack.c.b16 %v1665, %v1661
    %v1918 = vpack.c.b16 %v1666, %v1662
    %v1919 = vpack.c.b16 %v1667, %v1663
    %v1920 = vpack.c.b16 %v1672, %v1668
    %v1921 = vpack.c.b16 %v1673, %v1669
    %v1922 = vpack.c.b16 %v1674, %v1670
    %v1923 = vpack.c.b16 %v1675, %v1671
    %v1924 = vpack.c.b16 %v1680, %v1676
    %v1925 = vpack.c.b16 %v1681, %v1677
    %v1926 = vpack.c.b16 %v1682, %v1678
    %v1927 = vpack.c.b16 %v1683, %v1679
    %v1928 = vpack.c.b16 %v1688, %v1684
    %v1929 = vpack.c.b16 %v1689, %v1685
    %v1930 = vpack.c.b16 %v1690, %v1686
    %v1931 = vpack.c.b16 %v1691, %v1687
    %v1932 = vpack.c.b16 %v1696, %v1692
    %v1933 = vpack.c.b16 %v1697, %v1693
    %v1934 = vpack.c.b16 %v1698, %v1694
    %v1935 = vpack.c.b16 %v1699, %v1695
    %v1936 = vpack.c.b16 %v1704, %v1700
    %v1937 = vpack.c.b16 %v1705, %v1701
    %v1938 = vpack.c.b16 %v1706, %v1702
    %v1939 = vpack.c.b16 %v1707, %v1703
    %v1940 = vpack.c.b16 %v1712, %v1708
    %v1941 = vpack.c.b16 %v1713, %v1709
    %v1942 = vpack.c.b16 %v1714, %v1710
    %v1943 = vpack.c.b16 %v1715, %v1711
    %v1944 = vpack.c.b16 %v1720, %v1716
    %v1945 = vpack.c.b16 %v1721, %v1717
    %v1946 = vpack.c.b16 %v1722, %v1718
    %v1947 = vpack.c.b16 %v1723, %v1719
    %v1948 = vpack.c.b16 %v1728, %v1724
    %v1949 = vpack.c.b16 %v1729, %v1725
    %v1950 = vpack.c.b16 %v1730, %v1726
    %v1951 = vpack.c.b16 %v1731, %v1727
    %v1952 = vpack.c.b16 %v1736, %v1732
    %v1953 = vpack.c.b16 %v1737, %v1733
    %v1954 = vpack.c.b16 %v1738, %v1734
    %v1955 = vpack.c.b16 %v1739, %v1735
    %v1956 = vpack.c.b16 %v1744, %v1740
    %v1957 = vpack.c.b16 %v1745, %v1741
    %v1958 = vpack.c.b16 %v1746, %v1742
    %v1959 = vpack.c.b16 %v1747, %v1743
    %v1960 = vpack.c.b16 %v1752, %v1748
    %v1961 = vpack.c.b16 %v1753, %v1749
    %v1962 = vpack.c.b16 %v1754, %v1750
    %v1963 = vpack.c.b16 %v1755, %v1751
    %v1964 = vpack.c.b16 %v1760, %v1756
    %v1965 = vpack.c.b16 %v1761, %v1757
    %v1966 = vpack.c.b16 %v1762, %v1758
    %v1967 = vpack.c.b16 %v1763, %v1759
    %v1968 = vpack.c.b16 %v1768, %v1764
    %v1969 = vpack.c.b16 %v1769, %v1765
    %v1970 = vpack.c.b16 %v1770, %v1766
    %v1971 = vpack.c.b16 %v1771, %v1767
    %v1972 = vpack.c.b16 %v1776, %v1772
    %v1973 = vpack.c.b16 %v1777, %v1773
    %v1974 = vpack.c.b16 %v1778, %v1774
    %v1975 = vpack.c.b16 %v1779, %v1775
    %v1976 = vpack.c.b16 %v1784, %v1780
    %v1977 = vpack.c.b16 %v1785, %v1781
    %v1978 = vpack.c.b16 %v1786, %v1782
    %v1979 = vpack.c.b16 %v1787, %v1783
    %v1980 = vpack.c.b16 %v1792, %v1788
    %v1981 = vpack.c.b16 %v1793, %v1789
    %v1982 = vpack.c.b16 %v1794, %v1790
    %v1983 = vpack.c.b16 %v1795, %v1791
    %v1984 = vpack.c.b16 %v1800, %v1796
    %v1985 = vpack.c.b16 %v1801, %v1797
    %v1986 = vpack.c.b16 %v1802, %v1798
    %v1987 = vpack.c.b16 %v1803, %v1799
    %v1988 = vpack.c.b16 %v1808, %v1804
    %v1989 = vpack.c.b16 %v1809, %v1805
    %v1990 = vpack.c.b16 %v1810, %v1806
    %v1991 = vpack.c.b16 %v1811, %v1807
    %v1992 = vpack.c.b16 %v1816, %v1812
    %v1993 = vpack.c.b16 %v1817, %v1813
    %v1994 = vpack.c.b16 %v1818, %v1814
    %v1995 = vpack.c.b16 %v1819, %v1815
    %v1996 = vpack.c.b16 %v1824, %v1820
    %v1997 = vpack.c.b16 %v1825, %v1821
    %v1998 = vpack.c.b16 %v1826, %v1822
    %v1999 = vpack.c.b16 %v1827, %v1823
    %v2000 = vpack.c.b16 %v1832, %v1828
    %v2001 = vpack.c.b16 %v1833, %v1829
    %v2002 = vpack.c.b16 %v1834, %v1830
    %v2003 = vpack.c.b16 %v1835, %v1831
    %v2004 = vpack.c.b16 %v1840, %v1836
    %v2005 = vpack.c.b16 %v1841, %v1837
    %v2006 = vpack.c.b16 %v1842, %v1838
    %v2007 = vpack.c.b16 %v1843, %v1839
    %v2008 = vpack.c.b16 %v1848, %v1844
    %v2009 = vpack.c.b16 %v1849, %v1845
    %v2010 = vpack.c.b16 %v1850, %v1846
    %v2011 = vpack.c.b16 %v1851, %v1847
    %v2012 = vpack.c.b16 %v1856, %v1852
    %v2013 = vpack.c.b16 %v1857, %v1853
    %v2014 = vpack.c.b16 %v1858, %v1854
    %v2015 = vpack.c.b16 %v1859, %v1855
    %v2016 = vpack.c.b16 %v1864, %v1860
    %v2017 = vpack.c.b16 %v1865, %v1861
    %v2018 = vpack.c.b16 %v1866, %v1862
    %v2019 = vpack.c.b16 %v1867, %v1863
    %v2020 = vpack.c.b16 %v1872, %v1868
    %v2021 = vpack.c.b16 %v1873, %v1869
    %v2022 = vpack.c.b16 %v1874, %v1870
    %v2023 = vpack.c.b16 %v1875, %v1871
    %v2024 = vpack.c.b16 %v1880, %v1876
    %v2025 = vpack.c.b16 %v1881, %v1877
    %v2026 = vpack.c.b16 %v1882, %v1878
    %v2027 = vpack.c.b16 %v1883, %v1879
    %v2028 = vpack.c.b16 %v1888, %v1884
    %v2029 = vpack.c.b16 %v1889, %v1885
    %v2030 = vpack.c.b16 %v1890, %v1886
    %v2031 = vpack.c.b16 %v1891, %v1887
    %v2032 = vpack.c.b16 %v1896, %v1892
    %v2033 = vpack.c.b16 %v1897, %v1893
    %v2034 = vpack.c.b16 %v1898, %v1894
    %v2035 = vpack.c.b16 %v1899, %v1895
    %v2036 = vpack.c.b16 %v1904, %v1900
    %v2037 = vpack.c.b16 %v1905, %v1901
    %v2038 = vpack.c.b16 %v1906, %v1902
    %v2039 = vpack.c.b16 %v1907, %v1903
    %v2040 = vpack.c.b16 %v1912, %v1908
    %v2041 = vpack.c.b16 %v1913, %v1909
    %v2042 = vpack.c.b16 %v1914, %v1910
    %v2043 = vpack.c.b16 %v1915, %v1911
    %2172 = vmatprep.subr.bf16.mxu0 %v1917
    %2173 = vmatpush1.bf16.msra.mxu0 %v1916
    %2174 = vmatprep.subr.bf16.mxu0 %v1921
    %2175 = vmatpush1.bf16.msra.mxu0 %v1920
    %2176 = vmatprep.subr.bf16.mxu0 %v1925
    %2177 = vmatpush1.bf16.msra.mxu0 %v1924
    %2178 = vmatprep.subr.bf16.mxu0 %v1929
    %2179 = vmatpush1.bf16.msra.mxu0 %v1928
    %2180 = vmatprep.subr.bf16.mxu0 %v1933
    %2181 = vmatpush1.bf16.msra.mxu0 %v1932
    %2182 = vmatprep.subr.bf16.mxu0 %v1937
    %2183 = vmatpush1.bf16.msra.mxu0 %v1936
    %2184 = vmatprep.subr.bf16.mxu0 %v1941
    %2185 = vmatpush1.bf16.msra.mxu0 %v1940
    %2186 = vmatprep.subr.bf16.mxu0 %v1945
    %2187 = vmatpush1.bf16.msra.mxu0 %v1944
    %2188 = vmatprep.subr.bf16.mxu0 %v1949
    %2189 = vmatpush1.bf16.msra.mxu0 %v1948
    %2190 = vmatprep.subr.bf16.mxu0 %v1953
    %2191 = vmatpush1.bf16.msra.mxu0 %v1952
    %2192 = vmatprep.subr.bf16.mxu0 %v1957
    %2193 = vmatpush1.bf16.msra.mxu0 %v1956
    %2194 = vmatprep.subr.bf16.mxu0 %v1961
    %2195 = vmatpush1.bf16.msra.mxu0 %v1960
    %2196 = vmatprep.subr.bf16.mxu0 %v1965
    %2197 = vmatpush1.bf16.msra.mxu0 %v1964
    %2198 = vmatprep.subr.bf16.mxu0 %v1969
    %2199 = vmatpush1.bf16.msra.mxu0 %v1968
    %2200 = vmatprep.subr.bf16.mxu0 %v1973
    %2201 = vmatpush1.bf16.msra.mxu0 %v1972
    %2202 = vmatprep.subr.bf16.mxu0 %v1977
    %2203 = vmatpush1.bf16.msra.mxu0 %v1976
    %2204 = vmatprep.mubr.bf16.mxu0 %v1379
    %2205 = vmatmul.mubr.bf16.gmra.mrb[0].mxu0 %v1378
    %v2206 = vpop.f32.mrb[0].mxu0
    %v2207 = vadd.f32 %v1515, %v2206
    %v2208 = vpop.f32.mrb[0].mxu0
    %v2209 = vadd.f32 %v1519, %v2208
    %v2210 = vpop.f32.mrb[0].mxu0
    %v2211 = vadd.f32 %v1515, %v2210
    %v2212 = vpop.f32.mrb[0].mxu0
    %v2213 = vadd.f32 %v1519, %v2212
    %2214 = vdwg.mxu0
    %2215 = vmatprep.subr.bf16.mxu0 %v1981
    %2216 = vmatpush1.bf16.msra.mxu0 %v1980
    %2217 = vmatprep.subr.bf16.mxu0 %v1985
    %2218 = vmatpush1.bf16.msra.mxu0 %v1984
    %2219 = vmatprep.subr.bf16.mxu0 %v1989
    %2220 = vmatpush1.bf16.msra.mxu0 %v1988
    %2221 = vmatprep.subr.bf16.mxu0 %v1993
    %2222 = vmatpush1.bf16.msra.mxu0 %v1992
    %2223 = vmatprep.subr.bf16.mxu0 %v1997
    %2224 = vmatpush1.bf16.msra.mxu0 %v1996
    %2225 = vmatprep.subr.bf16.mxu0 %v2001
    %2226 = vmatpush1.bf16.msra.mxu0 %v2000
    %2227 = vmatprep.subr.bf16.mxu0 %v2005
    %2228 = vmatpush1.bf16.msra.mxu0 %v2004
    %2229 = vmatprep.subr.bf16.mxu0 %v2009
    %2230 = vmatpush1.bf16.msra.mxu0 %v2008
    %2231 = vmatprep.subr.bf16.mxu0 %v2013
    %2232 = vmatpush1.bf16.msra.mxu0 %v2012
    %2233 = vmatprep.subr.bf16.mxu0 %v2017
    %2234 = vmatpush1.bf16.msra.mxu0 %v2016
    %2235 = vmatprep.subr.bf16.mxu0 %v2021
    %2236 = vmatpush1.bf16.msra.mxu0 %v2020
    %2237 = vmatprep.subr.bf16.mxu0 %v2025
    %2238 = vmatpush1.bf16.msra.mxu0 %v2024
    %2239 = vmatprep.subr.bf16.mxu0 %v2029
    %2240 = vmatpush1.bf16.msra.mxu0 %v2028
    %2241 = vmatprep.subr.bf16.mxu0 %v2033
    %2242 = vmatpush1.bf16.msra.mxu0 %v2032
    %2243 = vmatprep.subr.bf16.mxu0 %v2037
    %2244 = vmatpush1.bf16.msra.mxu0 %v2036
    %2245 = vmatprep.subr.bf16.mxu0 %v2041
    %2246 = vmatpush1.bf16.msra.mxu0 %v2040
    %2247 = vmatprep.mubr.bf16.mxu0 %v1381
    %2248 = vmatmul.mubr.bf16.gmra.mrb[0].mxu0 %v1380
    %v2249 = vpop.f32.mrb[0].mxu0
    %v2250 = vadd.f32 %v2207, %v2249
    %v2251 = vpop.f32.mrb[0].mxu0
    %v2252 = vadd.f32 %v2209, %v2251
    %v2253 = vpop.f32.mrb[0].mxu0
    %v2254 = vadd.f32 %v2211, %v2253
    %v2255 = vpop.f32.mrb[0].mxu0
    %v2256 = vadd.f32 %v2213, %v2255
    %2257 = vdwg.mxu0
    %2258 = vmatprep.subr.bf16.mxu0 %v1919
    %2259 = vmatpush1.bf16.msra.mxu0 %v1918
    %2260 = vmatprep.subr.bf16.mxu0 %v1923
    %2261 = vmatpush1.bf16.msra.mxu0 %v1922
    %2262 = vmatprep.subr.bf16.mxu0 %v1927
    %2263 = vmatpush1.bf16.msra.mxu0 %v1926
    %2264 = vmatprep.subr.bf16.mxu0 %v1931
    %2265 = vmatpush1.bf16.msra.mxu0 %v1930
    %2266 = vmatprep.subr.bf16.mxu0 %v1935
    %2267 = vmatpush1.bf16.msra.mxu0 %v1934
    %2268 = vmatprep.subr.bf16.mxu0 %v1939
    %2269 = vmatpush1.bf16.msra.mxu0 %v1938
    %2270 = vmatprep.subr.bf16.mxu0 %v1943
    %2271 = vmatpush1.bf16.msra.mxu0 %v1942
    %2272 = vmatprep.subr.bf16.mxu0 %v1947
    %2273 = vmatpush1.bf16.msra.mxu0 %v1946
    %2274 = vmatprep.subr.bf16.mxu0 %v1951
    %2275 = vmatpush1.bf16.msra.mxu0 %v1950
    %2276 = vmatprep.subr.bf16.mxu0 %v1955
    %2277 = vmatpush1.bf16.msra.mxu0 %v1954
    %2278 = vmatprep.subr.bf16.mxu0 %v1959
    %2279 = vmatpush1.bf16.msra.mxu0 %v1958
    %2280 = vmatprep.subr.bf16.mxu0 %v1963
    %2281 = vmatpush1.bf16.msra.mxu0 %v1962
    %2282 = vmatprep.subr.bf16.mxu0 %v1967
    %2283 = vmatpush1.bf16.msra.mxu0 %v1966
    %2284 = vmatprep.subr.bf16.mxu0 %v1971
    %2285 = vmatpush1.bf16.msra.mxu0 %v1970
    %2286 = vmatprep.subr.bf16.mxu0 %v1975
    %2287 = vmatpush1.bf16.msra.mxu0 %v1974
    %2288 = vmatprep.subr.bf16.mxu0 %v1979
    %2289 = vmatpush1.bf16.msra.mxu0 %v1978
    %2290 = vmatprep.mubr.bf16.mxu0 %v1379
    %2291 = vmatmul.mubr.bf16.gmra.mrb[0].mxu0 %v1378
    %v2292 = vpop.f32.mrb[0].mxu0
    %v2293 = vadd.f32 %v1523, %v2292
    %v2294 = vpop.f32.mrb[0].mxu0
    %v2295 = vadd.f32 %v1527, %v2294
    %v2296 = vpop.f32.mrb[0].mxu0
    %v2297 = vadd.f32 %v1523, %v2296
    %v2298 = vpop.f32.mrb[0].mxu0
    %v2299 = vadd.f32 %v1527, %v2298
    %2300 = vdwg.mxu0
    %2301 = vmatprep.subr.bf16.mxu0 %v1983
    %2302 = vmatpush1.bf16.msra.mxu0 %v1982
    %2303 = vmatprep.subr.bf16.mxu0 %v1987
    %2304 = vmatpush1.bf16.msra.mxu0 %v1986
    %2305 = vmatprep.subr.bf16.mxu0 %v1991
    %2306 = vmatpush1.bf16.msra.mxu0 %v1990
    %2307 = vmatprep.subr.bf16.mxu0 %v1995
    %2308 = vmatpush1.bf16.msra.mxu0 %v1994
    %2309 = vmatprep.subr.bf16.mxu0 %v1999
    %2310 = vmatpush1.bf16.msra.mxu0 %v1998
    %2311 = vmatprep.subr.bf16.mxu0 %v2003
    %2312 = vmatpush1.bf16.msra.mxu0 %v2002
    %2313 = vmatprep.subr.bf16.mxu0 %v2007
    %2314 = vmatpush1.bf16.msra.mxu0 %v2006
    %2315 = vmatprep.subr.bf16.mxu0 %v2011
    %2316 = vmatpush1.bf16.msra.mxu0 %v2010
    %2317 = vmatprep.subr.bf16.mxu0 %v2015
    %2318 = vmatpush1.bf16.msra.mxu0 %v2014
    %2319 = vmatprep.subr.bf16.mxu0 %v2019
    %2320 = vmatpush1.bf16.msra.mxu0 %v2018
    %2321 = vmatprep.subr.bf16.mxu0 %v2023
    %2322 = vmatpush1.bf16.msra.mxu0 %v2022
    %2323 = vmatprep.subr.bf16.mxu0 %v2027
    %2324 = vmatpush1.bf16.msra.mxu0 %v2026
    %2325 = vmatprep.subr.bf16.mxu0 %v2031
    %2326 = vmatpush1.bf16.msra.mxu0 %v2030
    %2327 = vmatprep.subr.bf16.mxu0 %v2035
    %2328 = vmatpush1.bf16.msra.mxu0 %v2034
    %2329 = vmatprep.subr.bf16.mxu0 %v2039
    %2330 = vmatpush1.bf16.msra.mxu0 %v2038
    %2331 = vmatprep.subr.bf16.mxu0 %v2043
    %2332 = vmatpush1.bf16.msra.mxu0 %v2042
    %2333 = vmatprep.mubr.bf16.mxu0 %v1381
    %2334 = vmatmul.mubr.bf16.gmra.mrb[0].mxu0 %v1380
    %v2335 = vpop.f32.mrb[0].mxu0
    %v2336 = vadd.f32 %v2293, %v2335
    %v2337 = vpop.f32.mrb[0].mxu0
    %v2338 = vadd.f32 %v2295, %v2337
    %v2339 = vpop.f32.mrb[0].mxu0
    %v2340 = vadd.f32 %v2297, %v2339
    %v2341 = vpop.f32.mrb[0].mxu0
    %v2342 = vadd.f32 %v2299, %v2341
    %2343 = vdwg.mxu0
    %v2344 = vmax.f32 %v2250, 0.0
    %v2345 = vmax.f32 %v2252, 0.0
    %v2346 = vmax.f32 %v2336, 0.0
    %v2347 = vmax.f32 %v2338, 0.0
    %v2348 = vmax.f32 %v2254, 0.0
    %v2349 = vmax.f32 %v2256, 0.0
    %v2350 = vmax.f32 %v2340, 0.0
    %v2351 = vmax.f32 %v2342, 0.0
    %v2352 = vpack.c.bf16 %v2348, %v2344
    %v2353 = vpack.c.bf16 %v2349, %v2345
    %v2354 = vpack.c.bf16 %v2350, %v2346
    %v2355 = vpack.c.bf16 %v2351, %v2347
    %v2356 = vld [vmem:[#allocation7] sm:$0xf]
    %v2357 = vld [vmem:[#allocation7 + $0x4] sm:$0xf]
    %v2358 = vld [vmem:[#allocation7 + $0x8] sm:$0xf]
    %v2359 = vld [vmem:[#allocation7 + $0xc] sm:$0xf]
    %v2360 = vld [vmem:[#allocation7 + $0x10] sm:$0xf]
    %v2361 = vld [vmem:[#allocation7 + $0x14] sm:$0xf]
    %v2362 = vld [vmem:[#allocation7 + $0x18] sm:$0xf]
    %v2363 = vld [vmem:[#allocation7 + $0x1c] sm:$0xf]
    %v2364 = vld [vmem:[#allocation7 + $0x20] sm:$0xf]
    %v2365 = vld [vmem:[#allocation7 + $0x24] sm:$0xf]
    %v2366 = vld [vmem:[#allocation7 + $0x28] sm:$0xf]
    %v2367 = vld [vmem:[#allocation7 + $0x2c] sm:$0xf]
    %v2368 = vld [vmem:[#allocation7 + $0x30] sm:$0xf]
    %v2369 = vld [vmem:[#allocation7 + $0x34] sm:$0xf]
    %v2370 = vld [vmem:[#allocation7 + $0x38] sm:$0xf]
    %v2371 = vld [vmem:[#allocation7 + $0x3c] sm:$0xf]
    %v2372 = vld [vmem:[#allocation7 + $0x40] sm:$0xf]
    %v2373 = vld [vmem:[#allocation7 + $0x44] sm:$0xf]
    %v2374 = vld [vmem:[#allocation7 + $0x48] sm:$0xf]
    %v2375 = vld [vmem:[#allocation7 + $0x4c] sm:$0xf]
    %v2376 = vld [vmem:[#allocation7 + $0x50] sm:$0xf]
    %v2377 = vld [vmem:[#allocation7 + $0x54] sm:$0xf]
    %v2378 = vld [vmem:[#allocation7 + $0x58] sm:$0xf]
    %v2379 = vld [vmem:[#allocation7 + $0x5c] sm:$0xf]
    %v2380 = vld [vmem:[#allocation7 + $0x60] sm:$0xf]
    %v2381 = vld [vmem:[#allocation7 + $0x64] sm:$0xf]
    %v2382 = vld [vmem:[#allocation7 + $0x68] sm:$0xf]
    %v2383 = vld [vmem:[#allocation7 + $0x6c] sm:$0xf]
    %v2384 = vld [vmem:[#allocation7 + $0x70] sm:$0xf]
    %v2385 = vld [vmem:[#allocation7 + $0x74] sm:$0xf]
    %v2386 = vld [vmem:[#allocation7 + $0x78] sm:$0xf]
    %v2387 = vld [vmem:[#allocation7 + $0x7c] sm:$0xf]
    %v2388 = vld [vmem:[#allocation7 + $0x80] sm:$0xf]
    %v2389 = vld [vmem:[#allocation7 + $0x84] sm:$0xf]
    %v2390 = vld [vmem:[#allocation7 + $0x88] sm:$0xf]
    %v2391 = vld [vmem:[#allocation7 + $0x8c] sm:$0xf]
    %v2392 = vld [vmem:[#allocation7 + $0x90] sm:$0xf]
    %v2393 = vld [vmem:[#allocation7 + $0x94] sm:$0xf]
    %v2394 = vld [vmem:[#allocation7 + $0x98] sm:$0xf]
    %v2395 = vld [vmem:[#allocation7 + $0x9c] sm:$0xf]
    %v2396 = vld [vmem:[#allocation7 + $0xa0] sm:$0xf]
    %v2397 = vld [vmem:[#allocation7 + $0xa4] sm:$0xf]
    %v2398 = vld [vmem:[#allocation7 + $0xa8] sm:$0xf]
    %v2399 = vld [vmem:[#allocation7 + $0xac] sm:$0xf]
    %v2400 = vld [vmem:[#allocation7 + $0xb0] sm:$0xf]
    %v2401 = vld [vmem:[#allocation7 + $0xb4] sm:$0xf]
    %v2402 = vld [vmem:[#allocation7 + $0xb8] sm:$0xf]
    %v2403 = vld [vmem:[#allocation7 + $0xbc] sm:$0xf]
    %v2404 = vld [vmem:[#allocation7 + $0xc0] sm:$0xf]
    %v2405 = vld [vmem:[#allocation7 + $0xc4] sm:$0xf]
    %v2406 = vld [vmem:[#allocation7 + $0xc8] sm:$0xf]
    %v2407 = vld [vmem:[#allocation7 + $0xcc] sm:$0xf]
    %v2408 = vld [vmem:[#allocation7 + $0xd0] sm:$0xf]
    %v2409 = vld [vmem:[#allocation7 + $0xd4] sm:$0xf]
    %v2410 = vld [vmem:[#allocation7 + $0xd8] sm:$0xf]
    %v2411 = vld [vmem:[#allocation7 + $0xdc] sm:$0xf]
    %v2412 = vld [vmem:[#allocation7 + $0xe0] sm:$0xf]
    %v2413 = vld [vmem:[#allocation7 + $0xe4] sm:$0xf]
    %v2414 = vld [vmem:[#allocation7 + $0xe8] sm:$0xf]
    %v2415 = vld [vmem:[#allocation7 + $0xec] sm:$0xf]
    %v2416 = vld [vmem:[#allocation7 + $0xf0] sm:$0xf]
    %v2417 = vld [vmem:[#allocation7 + $0xf4] sm:$0xf]
    %v2418 = vld [vmem:[#allocation7 + $0xf8] sm:$0xf]
    %v2419 = vld [vmem:[#allocation7 + $0xfc] sm:$0xf]
    %v2420 = vld [vmem:[%s8] sm:$0x1]
    %v2422 = vlaneseq
    %v2423 = vshrl.u32 %v2422, 7
    %v2424 = vsub.s32 0, %v2423
    %v2425 = vrot.slane %v2420, %v2424
    %v2491 = vunpack.c.l.b16 %v2356
    %v2492 = vunpack.c.l.b16 %v2357
    %v2493 = vunpack.c.l.b16 %v2358
    %v2494 = vunpack.c.l.b16 %v2359
    %v2495 = vunpack.c.l.b16 %v2360
    %v2496 = vunpack.c.l.b16 %v2361
    %v2497 = vunpack.c.l.b16 %v2362
    %v2498 = vunpack.c.l.b16 %v2363
    %v2499 = vunpack.c.l.b16 %v2364
    %v2500 = vunpack.c.l.b16 %v2365
    %v2501 = vunpack.c.l.b16 %v2366
    %v2502 = vunpack.c.l.b16 %v2367
    %v2503 = vunpack.c.l.b16 %v2368
    %v2504 = vunpack.c.l.b16 %v2369
    %v2505 = vunpack.c.l.b16 %v2370
    %v2506 = vunpack.c.l.b16 %v2371
    %v2507 = vunpack.c.l.b16 %v2372
    %v2508 = vunpack.c.l.b16 %v2373
    %v2509 = vunpack.c.l.b16 %v2374
    %v2510 = vunpack.c.l.b16 %v2375
    %v2511 = vunpack.c.l.b16 %v2376
    %v2512 = vunpack.c.l.b16 %v2377
    %v2513 = vunpack.c.l.b16 %v2378
    %v2514 = vunpack.c.l.b16 %v2379
    %v2515 = vunpack.c.l.b16 %v2380
    %v2516 = vunpack.c.l.b16 %v2381
    %v2517 = vunpack.c.l.b16 %v2382
    %v2518 = vunpack.c.l.b16 %v2383
    %v2519 = vunpack.c.l.b16 %v2384
    %v2520 = vunpack.c.l.b16 %v2385
    %v2521 = vunpack.c.l.b16 %v2386
    %v2522 = vunpack.c.l.b16 %v2387
    %v2523 = vunpack.c.l.b16 %v2388
    %v2524 = vunpack.c.l.b16 %v2389
    %v2525 = vunpack.c.l.b16 %v2390
    %v2526 = vunpack.c.l.b16 %v2391
    %v2527 = vunpack.c.l.b16 %v2392
    %v2528 = vunpack.c.l.b16 %v2393
    %v2529 = vunpack.c.l.b16 %v2394
    %v2530 = vunpack.c.l.b16 %v2395
    %v2531 = vunpack.c.l.b16 %v2396
    %v2532 = vunpack.c.l.b16 %v2397
    %v2533 = vunpack.c.l.b16 %v2398
    %v2534 = vunpack.c.l.b16 %v2399
    %v2535 = vunpack.c.l.b16 %v2400
    %v2536 = vunpack.c.l.b16 %v2401
    %v2537 = vunpack.c.l.b16 %v2402
    %v2538 = vunpack.c.l.b16 %v2403
    %v2539 = vunpack.c.l.b16 %v2404
    %v2540 = vunpack.c.l.b16 %v2405
    %v2541 = vunpack.c.l.b16 %v2406
    %v2542 = vunpack.c.l.b16 %v2407
    %v2543 = vunpack.c.l.b16 %v2408
    %v2544 = vunpack.c.l.b16 %v2409
    %v2545 = vunpack.c.l.b16 %v2410
    %v2546 = vunpack.c.l.b16 %v2411
    %v2547 = vunpack.c.l.b16 %v2412
    %v2548 = vunpack.c.l.b16 %v2413
    %v2549 = vunpack.c.l.b16 %v2414
    %v2550 = vunpack.c.l.b16 %v2415
    %v2551 = vunpack.c.l.b16 %v2416
    %v2552 = vunpack.c.l.b16 %v2417
    %v2553 = vunpack.c.l.b16 %v2418
    %v2554 = vunpack.c.l.b16 %v2419
    %v2555 = vpack.c.b16 %v2492, %v2491
    %v2556 = vpack.c.b16 %v2494, %v2493
    %v2557 = vpack.c.b16 %v2496, %v2495
    %v2558 = vpack.c.b16 %v2498, %v2497
    %v2559 = vpack.c.b16 %v2500, %v2499
    %v2560 = vpack.c.b16 %v2502, %v2501
    %v2561 = vpack.c.b16 %v2504, %v2503
    %v2562 = vpack.c.b16 %v2506, %v2505
    %v2563 = vpack.c.b16 %v2508, %v2507
    %v2564 = vpack.c.b16 %v2510, %v2509
    %v2565 = vpack.c.b16 %v2512, %v2511
    %v2566 = vpack.c.b16 %v2514, %v2513
    %v2567 = vpack.c.b16 %v2516, %v2515
    %v2568 = vpack.c.b16 %v2518, %v2517
    %v2569 = vpack.c.b16 %v2520, %v2519
    %v2570 = vpack.c.b16 %v2522, %v2521
    %v2571 = vpack.c.b16 %v2524, %v2523
    %v2572 = vpack.c.b16 %v2526, %v2525
    %v2573 = vpack.c.b16 %v2528, %v2527
    %v2574 = vpack.c.b16 %v2530, %v2529
    %v2575 = vpack.c.b16 %v2532, %v2531
    %v2576 = vpack.c.b16 %v2534, %v2533
    %v2577 = vpack.c.b16 %v2536, %v2535
    %v2578 = vpack.c.b16 %v2538, %v2537
    %v2579 = vpack.c.b16 %v2540, %v2539
    %v2580 = vpack.c.b16 %v2542, %v2541
    %v2581 = vpack.c.b16 %v2544, %v2543
    %v2582 = vpack.c.b16 %v2546, %v2545
    %v2583 = vpack.c.b16 %v2548, %v2547
    %v2584 = vpack.c.b16 %v2550, %v2549
    %v2585 = vpack.c.b16 %v2552, %v2551
    %v2586 = vpack.c.b16 %v2554, %v2553
    %2619 = vmatprep.subr.bf16.mxu0 0
    %2620 = vmatpush1.bf16.msra.mxu0 %v2555
    %2621 = vmatprep.subr.bf16.mxu0 0
    %2622 = vmatpush1.bf16.msra.mxu0 %v2556
    %2623 = vmatprep.subr.bf16.mxu0 0
    %2624 = vmatpush1.bf16.msra.mxu0 %v2557
    %2625 = vmatprep.subr.bf16.mxu0 0
    %2626 = vmatpush1.bf16.msra.mxu0 %v2558
    %2627 = vmatprep.subr.bf16.mxu0 0
    %2628 = vmatpush1.bf16.msra.mxu0 %v2559
    %2629 = vmatprep.subr.bf16.mxu0 0
    %2630 = vmatpush1.bf16.msra.mxu0 %v2560
    %2631 = vmatprep.subr.bf16.mxu0 0
    %2632 = vmatpush1.bf16.msra.mxu0 %v2561
    %2633 = vmatprep.subr.bf16.mxu0 0
    %2634 = vmatpush1.bf16.msra.mxu0 %v2562
    %2635 = vmatprep.subr.bf16.mxu0 0
    %2636 = vmatpush1.bf16.msra.mxu0 %v2563
    %2637 = vmatprep.subr.bf16.mxu0 0
    %2638 = vmatpush1.bf16.msra.mxu0 %v2564
    %2639 = vmatprep.subr.bf16.mxu0 0
    %2640 = vmatpush1.bf16.msra.mxu0 %v2565
    %2641 = vmatprep.subr.bf16.mxu0 0
    %2642 = vmatpush1.bf16.msra.mxu0 %v2566
    %2643 = vmatprep.subr.bf16.mxu0 0
    %2644 = vmatpush1.bf16.msra.mxu0 %v2567
    %2645 = vmatprep.subr.bf16.mxu0 0
    %2646 = vmatpush1.bf16.msra.mxu0 %v2568
    %2647 = vmatprep.subr.bf16.mxu0 0
    %2648 = vmatpush1.bf16.msra.mxu0 %v2569
    %2649 = vmatprep.subr.bf16.mxu0 0
    %2650 = vmatpush1.bf16.msra.mxu0 %v2570
    %2651 = vmatprep.mubr.bf16.mxu0 %v2353
    %2652 = vmatmul.mubr.bf16.gmra.mrb[0].mxu0 %v2352
    %v2653 = vpop.f32.mrb[0].mxu0
    %v2654 = vadd.f32 %v2425, %v2653
    %v2655 = vpop.f32.mrb[0].mxu0
    %v2656 = vpop.f32.mrb[0].mxu0
    %v2657 = vadd.f32 %v2425, %v2656
    %v2658 = vpop.f32.mrb[0].mxu0
    %2659 = vdwg.mxu0
    %2660 = vmatprep.subr.bf16.mxu0 0
    %2661 = vmatpush1.bf16.msra.mxu0 %v2571
    %2662 = vmatprep.subr.bf16.mxu0 0
    %2663 = vmatpush1.bf16.msra.mxu0 %v2572
    %2664 = vmatprep.subr.bf16.mxu0 0
    %2665 = vmatpush1.bf16.msra.mxu0 %v2573
    %2666 = vmatprep.subr.bf16.mxu0 0
    %2667 = vmatpush1.bf16.msra.mxu0 %v2574
    %2668 = vmatprep.subr.bf16.mxu0 0
    %2669 = vmatpush1.bf16.msra.mxu0 %v2575
    %2670 = vmatprep.subr.bf16.mxu0 0
    %2671 = vmatpush1.bf16.msra.mxu0 %v2576
    %2672 = vmatprep.subr.bf16.mxu0 0
    %2673 = vmatpush1.bf16.msra.mxu0 %v2577
    %2674 = vmatprep.subr.bf16.mxu0 0
    %2675 = vmatpush1.bf16.msra.mxu0 %v2578
    %2676 = vmatprep.subr.bf16.mxu0 0
    %2677 = vmatpush1.bf16.msra.mxu0 %v2579
    %2678 = vmatprep.subr.bf16.mxu0 0
    %2679 = vmatpush1.bf16.msra.mxu0 %v2580
    %2680 = vmatprep.subr.bf16.mxu0 0
    %2681 = vmatpush1.bf16.msra.mxu0 %v2581
    %2682 = vmatprep.subr.bf16.mxu0 0
    %2683 = vmatpush1.bf16.msra.mxu0 %v2582
    %2684 = vmatprep.subr.bf16.mxu0 0
    %2685 = vmatpush1.bf16.msra.mxu0 %v2583
    %2686 = vmatprep.subr.bf16.mxu0 0
    %2687 = vmatpush1.bf16.msra.mxu0 %v2584
    %2688 = vmatprep.subr.bf16.mxu0 0
    %2689 = vmatpush1.bf16.msra.mxu0 %v2585
    %2690 = vmatprep.subr.bf16.mxu0 0
    %2691 = vmatpush1.bf16.msra.mxu0 %v2586
    %2692 = vmatprep.mubr.bf16.mxu0 %v2355
    %2693 = vmatmul.mubr.bf16.gmra.mrb[0].mxu0 %v2354
    %v2694 = vpop.f32.mrb[0].mxu0
    %v2695 = vadd.f32 %v2654, %v2694
    %v2696 = vpop.f32.mrb[0].mxu0
    %v2697 = vpop.f32.mrb[0].mxu0
    %v2698 = vadd.f32 %v2657, %v2697
    %v2699 = vpop.f32.mrb[0].mxu0
    %2700 = vdwg.mxu0
    %2701 = vst [vmem:[%s9] sm:$0xff] %v2695
    %2702 = vst [vmem:[%s9 + $0x8] sm:$0xff] %v2698
    // Predicated region
    $region54: #{mlp_forward.1} parent=1 // pred_check
      _
    $region55: #{mlp_forward.1} parent=1 // pred_check_branch
      %2704 = sbr.rel (0) target = $region57
    $region56: #{mlp_forward.1} parent=1 // pred_region
      _
    $region57: #{mlp_forward.1} parent=1 // pred_fallthru
      _
    // Predicated region
    $region58: #{mlp_forward.1} parent=1 // pred_check
      _
    $region59: #{mlp_forward.1} parent=1 // pred_check_branch
      %2706 = sbr.rel (0) target = $region61
    $region60: #{mlp_forward.1} parent=1 // pred_region
      _
    $region61: #{mlp_forward.1} parent=1 // pred_fallthru
      _
    %2707 = vsyncpa [#allocation3], 1
    %2708 = vsyncpa [#allocation5], 1
    %2709 = vsyncpa [#allocation8], 1

</llo_original>
